<compile_context>
chip_gen: v6e
topology: v6e:2x2x1
jax: 0.10.0
libtpu: 0.0.40
codegen_flags: <defaults>
</compile_context>

<pallas_src>
import jax
import jax.numpy as jnp
from jax import lax
from jax.experimental import pallas as pl
from jax.experimental.pallas import tpu as pltpu


def _round_up(x, d):
    return ((x + d - 1) // d) * d


def _pick_tm(m, *, cap=1024, granule=256, min_steps=4):
    """Lane-tile size: multiple of `granule`, capped at `cap`, and small enough
    that the 1-D grid has >= min_steps steps whenever m allows it (v7x megacore
    needs >= 2 steps; DMA/compute overlap likes >= 3)."""
    tm = _round_up(max(-(-m // min_steps), granule), granule)
    return min(tm, cap, _round_up(m, granule))


# ----------------------------- Pallas kernels -------------------------------

def _convbn_kernel(p_ref, w_ref, o_ref):
    # p: (K+1, TM) bf16 im2col patches (+ constant-1 row); w: (Cout, K+1) bf16
    # BN-scale-folded weights (+ bias/BN-shift column); o: (Cout, TM).
    o_ref[...] = jnp.dot(w_ref[...], p_ref[...],
                         preferred_element_type=jnp.float32).astype(o_ref.dtype)


def _dcn_kernel(v_ref, w_ref, o_ref):
    # v: (K, TM) bf16 bilinear-sampled patches (4 corners pre-summed in f32);
    # w: (Cout, K) bf16 block-diagonal grouped-conv weight; o: (Cout, TM).
    acc = jnp.dot(w_ref[...], v_ref[...], preferred_element_type=jnp.float32)
    o_ref[...] = jnp.maximum(acc, 0.0).astype(o_ref.dtype)      # fused ReLU


# ----------------------------- conv + BN wrapper -----------------------------

def conv3x3_bn_cm(x_cm, w, b, gamma, beta, rmean, rvar, *, stride, eps=1e-5,
                  out_dtype=jnp.float32):
    """Conv2d(k=3, stride, pad=1) + BatchNorm(eval), channel-major layout:
    (Cin, N, H, W) -> (Cout, N, Ho, Wo).

    BN scale folded into the weights; conv bias + BN shift folded into the
    matmul via a constant-1 input row, so the kernel body is one bf16 matmul
    with f32 accumulation."""
    cin, n, hin, win = x_cm.shape
    cout = w.shape[0]
    hout = (hin + 2 - 3) // stride + 1
    wout = (win + 2 - 3) // stride + 1
    k = 9 * cin
    m = n * hout * wout

    # bf16 BEFORE the 9x im2col expansion (halves the largest glue tensor).
    # TODO(synk): im2col is still materialized in HBM; a halo-tiled direct-conv
    # kernel would remove that round trip.
    xp = jnp.pad(x_cm.astype(jnp.bfloat16), ((0, 0), (0, 0), (1, 1), (1, 1)))
    cols = []
    for ki in range(3):
        for kj in range(3):
            cols.append(xp[:, :, ki:ki + stride * (hout - 1) + 1:stride,
                               kj:kj + stride * (wout - 1) + 1:stride])
    # channel-major input -> K=(tap, cin), M=(n, h, w) with no transpose
    p = jnp.stack(cols, axis=0).reshape(k, m)
    p = jnp.concatenate([p, jnp.ones((1, m), jnp.bfloat16)], axis=0)   # (K+1, M)

    scale = gamma / jnp.sqrt(rvar + eps)                               # (Cout,)
    wm = w.transpose(0, 2, 3, 1).reshape(cout, k) * scale[:, None]     # K=(tap,cin)
    shift = ((b - rmean) * scale + beta).reshape(cout, 1)              # bias + BN shift
    wm = jnp.concatenate([wm, shift], axis=1).astype(jnp.bfloat16)     # (Cout, K+1)

    tm = _pick_tm(m)
    mp = _round_up(m, tm)
    p = jnp.pad(p, ((0, 0), (0, mp - m)))

    out = pl.pallas_call(
        _convbn_kernel,
        out_shape=jax.ShapeDtypeStruct((cout, mp), out_dtype),
        grid=(mp // tm,),
        in_specs=[
            pl.BlockSpec((k + 1, tm), lambda i: (0, i)),
            pl.BlockSpec((cout, k + 1), lambda i: (0, 0)),
        ],
        out_specs=pl.BlockSpec((cout, tm), lambda i: (0, i)),
        compiler_params=pltpu.CompilerParams(
            dimension_semantics=("parallel",),
            vmem_limit_bytes=32 * 1024 * 1024),
    )(p, wm)

    return out[:, :m].reshape(cout, n, hout, wout)                     # channel-major


# ----------------------------- deformable conv -------------------------------

def _dcn_bilinear_patches(x, offset, groups, out_dtype=jnp.bfloat16):
    """Bilinear-sample the 9 DCN-v1 taps (k=3, s=1, p=1, mmcv semantics).

    x: (N, Cin, H, W) f32; offset: (N, G*18, Ho, Wo) NCHW with (g, tap, [dy,dx])
    channel ordering.  Returns (K, M) in `out_dtype` with K ordered
    (g, cg, tap) and M ordered (n, h, w); the 4 bilinear corners are weighted
    and summed in f32 before the final cast."""
    n, cin, hin, win = x.shape
    g = groups
    cg = cin // g
    kk = 9
    hout, wout = offset.shape[2], offset.shape[3]
    m = n * hout * wout
    k = cin * kk
    L = kk * hout * wout

    off = offset.reshape(n, g, kk, 2, hout, wout).astype(jnp.float32)
    off_y, off_x = off[:, :, :, 0], off[:, :, :, 1]          # [dy, dx] interleaved

    ki = (jnp.arange(kk) // 3).astype(jnp.float32)
    kj = (jnp.arange(kk) % 3).astype(jnp.float32)
    hs = jnp.arange(hout, dtype=jnp.float32)
    ws = jnp.arange(wout, dtype=jnp.float32)
    p_y = off_y + (hs[None, :, None] - 1.0 + ki[:, None, None])[None, None]
    p_x = off_x + (ws[None, None, :] - 1.0 + kj[:, None, None])[None, None]
    # p_y / p_x: (n, g, kk, hout, wout)

    y0f = jnp.floor(p_y)
    x0f = jnp.floor(p_x)
    ly = p_y - y0f
    lx = p_x - x0f
    y0 = y0f.astype(jnp.int32)
    x0 = x0f.astype(jnp.int32)

    # One row gather per (n, g, sample): index is (n, g, L, 1); the cg channels
    # come along as the trailing slice dim (no index broadcast over cg).
    x_rows = x.astype(jnp.float32).reshape(n, g, cg, hin * win)
    x_rows = x_rows.transpose(0, 1, 3, 2)                    # (n, g, H*W, cg)

    def corner(yi, xi, wt):
        valid = (yi >= 0) & (yi < hin) & (xi >= 0) & (xi < win)
        idx = jnp.clip(yi, 0, hin - 1) * win + jnp.clip(xi, 0, win - 1)
        idx = idx.reshape(n, g, L, 1)
        v = jnp.take_along_axis(x_rows, idx, axis=2)         # (n, g, L, cg)
        wz = jnp.where(valid, wt, 0.0).reshape(n, g, L, 1)   # OOR corner -> 0
        return v * wz

    acc = (corner(y0,     x0,     (1.0 - ly) * (1.0 - lx))
           + corner(y0,     x0 + 1, (1.0 - ly) * lx)
           + corner(y0 + 1, x0,     ly * (1.0 - lx))
           + corner(y0 + 1, x0 + 1, ly * lx))                # f32 corner sum
    acc = acc.astype(out_dtype)                              # cast before transpose
    acc = acc.reshape(n, g, kk, hout, wout, cg)
    acc = acc.transpose(1, 5, 2, 0, 3, 4).reshape(k, m)      # K=(g,cg,tap), M=(n,h,w)
    return acc


def _dcn_block_diag_weight(weight, groups):
    """(Cout, Cin/g, 3, 3) grouped-conv weight -> block-diagonal (Cout, Cin*9)
    with K ordered (g, cg, tap)."""
    cout = weight.shape[0]
    g = groups
    cog = cout // g
    cgk = weight.shape[1] * 9
    w_r = weight.reshape(g, cog, cgk)
    eye = jnp.eye(g, dtype=weight.dtype)
    return jnp.einsum('gij,gh->gihj', w_r, eye).reshape(cout, g * cgk)


def deform_conv_relu(x, offset, weight, *, groups):
    """DCN v1 (k=3, s=1, p=1), groups == deform_groups, bias=False, + ReLU."""
    n, cin, hin, win = x.shape
    cout = weight.shape[0]
    hout, wout = offset.shape[2], offset.shape[3]
    k = cin * 9
    m = n * hout * wout

    # TODO(synk): the data-dependent bilinear gather stays in XLA glue; fusing
    # it into the kernel (memory_space=pl.ANY + manual DMA with prefetched row
    # indices) would remove the (K, M) HBM round trip entirely.
    vals = _dcn_bilinear_patches(x, offset, groups)           # (K, M) bf16
    w_bd = _dcn_block_diag_weight(weight, groups).astype(jnp.bfloat16)

    tm = _pick_tm(m)
    mp = _round_up(m, tm)
    vals = jnp.pad(vals, ((0, 0), (0, mp - m)))

    out = pl.pallas_call(
        _dcn_kernel,
        out_shape=jax.ShapeDtypeStruct((cout, mp), jnp.float32),
        grid=(mp // tm,),
        in_specs=[
            pl.BlockSpec((k, tm), lambda i: (0, i)),
            pl.BlockSpec((cout, k), lambda i: (0, 0)),
        ],
        out_specs=pl.BlockSpec((cout, tm), lambda i: (0, i)),
        compiler_params=pltpu.CompilerParams(
            dimension_semantics=("parallel",),
            vmem_limit_bytes=32 * 1024 * 1024),
    )(vals, w_bd)

    return out[:, :m].reshape(cout, n, hout, wout).transpose(1, 0, 2, 3)


# ----------------------------- ALAU forward ----------------------------------

def alau_forward(params, x, shape):
    """ALAU.forward: offset = conv_offset(shape); x = relu(dcn(x, offset))."""
    # shape.detach() is a no-op in a pure forward pass.
    shape_cm = shape.transpose(1, 0, 2, 3)                    # (2, N, 4H, 4W), tiny
    h = conv3x3_bn_cm(shape_cm, params["w1"], params["b1"], params["g1"],
                      params["be1"], params["m1"], params["v1"], stride=2,
                      out_dtype=jnp.bfloat16)                 # channel-major bf16
    off_cm = conv3x3_bn_cm(h, params["w2"], params["b2"], params["g2"],
                           params["be2"], params["m2"], params["v2"], stride=2,
                           out_dtype=jnp.float32)
    offset = off_cm.transpose(1, 0, 2, 3)                     # NCHW (also returned)
    out = deform_conv_relu(x, offset, params["wd"], groups=4)
    return out, offset


# ----------------------------- parameters ------------------------------------

def init_params(key, in_channels, out_channels, deform_groups=4):
    offset_channels = 3 * 3 * 2                       # 18
    hidden = deform_groups * offset_channels // 2     # 36
    full = deform_groups * offset_channels            # 72
    k1, k2, k3 = jax.random.split(key, 3)
    f32 = jnp.float32
    return dict(
        # PatchEmbed 1: Conv2d(2 -> 36, k=3, s=2, p=1), init N(0, 0.001), bias=0
        w1=0.001 * jax.random.normal(k1, (hidden, 2, 3, 3), f32),
        b1=jnp.zeros((hidden,), f32),
        g1=jnp.ones((hidden,), f32), be1=jnp.zeros((hidden,), f32),
        m1=jnp.zeros((hidden,), f32), v1=jnp.ones((hidden,), f32),
        # PatchEmbed 2: Conv2d(36 -> 72, k=3, s=2, p=1)
        w2=0.001 * jax.random.normal(k2, (full, hidden, 3, 3), f32),
        b2=jnp.zeros((full,), f32),
        g2=jnp.ones((full,), f32), be2=jnp.zeros((full,), f32),
        m2=jnp.zeros((full,), f32), v2=jnp.ones((full,), f32),
        # DeformConv2d weight: (Cout, Cin/groups, 3, 3), bias=False (DCN v1)
        wd=0.1 * jax.random.normal(
            k3, (out_channels, in_channels // deform_groups, 3, 3), f32),
    )


# ----------------------------- main -------------------------------------------

if __name__ == "__main__":
    key = jax.random.PRNGKey(0)
    kx, ks, kp = jax.random.split(key, 3)

    in_channels, out_channels, deform_groups = 8, 8, 4
    N, H, W = 2, 16, 16
    x = jax.random.normal(kx, (N, in_channels, H, W), jnp.float32)
    # "shape" map: 2 channels, 4x spatial so two stride-2 PatchEmbeds land on (H, W)
    shape_map = jax.random.normal(ks, (N, 2, 4 * H, 4 * W), jnp.float32)
    params = init_params(kp, in_channels, out_channels, deform_groups)

    fwd = jax.jit(alau_forward)
    out, offset = fwd(params, x, shape_map)
    out = jax.block_until_ready(out)
    offset = jax.block_until_ready(offset)

    # conv+BN Pallas kernel vs XLA f32 reference (bf16-input tolerance)
    ref = lax.conv_general_dilated(
        shape_map, params["w1"], (2, 2), [(1, 1), (1, 1)],
        dimension_numbers=("NCHW", "OIHW", "NCHW"))
    ref = ref + params["b1"][None, :, None, None]
    ref = ((ref - params["m1"][None, :, None, None])
           / jnp.sqrt(params["v1"][None, :, None, None] + 1e-5)
           * params["g1"][None, :, None, None]
           + params["be1"][None, :, None, None])
    got = conv3x3_bn_cm(shape_map.transpose(1, 0, 2, 3), params["w1"],
                        params["b1"], params["g1"], params["be1"],
                        params["m1"], params["v1"], stride=2)
    got = got.transpose(1, 0, 2, 3)
    assert jnp.allclose(got, ref, atol=2e-4, rtol=5e-2), \
        float(jnp.max(jnp.abs(got - ref)))

    # DCN Pallas kernel vs f32 matmul reference on f32 bilinear patches
    vals_f32 = _dcn_bilinear_patches(x, offset, deform_groups,
                                     out_dtype=jnp.float32)
    w_bd_f32 = _dcn_block_diag_weight(params["wd"], deform_groups)
    dcn_ref = jnp.maximum(w_bd_f32 @ vals_f32, 0.0)
    dcn_ref = dcn_ref.reshape(out_channels, N, H, W).transpose(1, 0, 2, 3)
    assert jnp.allclose(out, dcn_ref, atol=3e-2, rtol=5e-2), \
        float(jnp.max(jnp.abs(out - dcn_ref)))

    assert out.shape == (N, out_channels, H, W)
    assert offset.shape == (N, deform_groups * 18, H, W)
    assert bool(jnp.all(jnp.isfinite(out))) and bool(jnp.all(out >= 0.0))

    # TODO(synk): DeformConv2d source not provided; assumed mmcv DCN v1 with
    # groups == deform_groups == 4 and no bias (consistent with 72 offset chans).
    print("KERNEL_OK")
</pallas_src>

<mosaic_0001>
module attributes {stable_mosaic.version = 11 : i64} {
  func.func @_convbn_kernel(%arg0: i32, %arg1: memref<19x512xbf16, #tpu.memory_space<vmem>>, %arg2: memref<36x19xbf16, #tpu.memory_space<vmem>>, %arg3: memref<36x512xbf16, #tpu.memory_space<vmem>>) attributes {dimension_semantics = [#tpu.dimension_semantics<parallel>], iteration_bounds = array<i64: 4>, scalar_prefetch = 0 : i64, scratch_operands = 0 : i64, tpu.core_type = #tpu.core_type<tc>, window_params = [{transform_indices = @transform_0, window_bounds = array<i64: 19, 512>}, {pipeline_mode = #tpu.pipeline_mode<synchronous>, transform_indices = @transform_1, window_bounds = array<i64: 36, 19>}, {transform_indices = @transform_2, window_bounds = array<i64: 36, 512>}]} {
    %c0 = arith.constant 0 : index
    %c0_0 = arith.constant 0 : index
    %0 = vector.load %arg2[%c0, %c0_0] : memref<36x19xbf16, #tpu.memory_space<vmem>>, vector<36x19xbf16>
    %c0_1 = arith.constant 0 : index
    %c0_2 = arith.constant 0 : index
    %1 = vector.load %arg1[%c0_1, %c0_2] : memref<19x512xbf16, #tpu.memory_space<vmem>>, vector<19x512xbf16>
    %cst = arith.constant dense<0.000000e+00> : vector<36x512xf32>
    %2 = tpu.matmul %0, %1, %cst {dimension_numbers = #tpu.dot_dimension_numbers<[1], [0], [0], [1], [0, 0, 1, 1], [], []>} : vector<36x19xbf16>, vector<19x512xbf16>, vector<36x512xf32> -> vector<36x512xf32>
    %3 = arith.truncf %2 : vector<36x512xf32> to vector<36x512xbf16>
    %c0_3 = arith.constant 0 : index
    %c0_4 = arith.constant 0 : index
    %4 = vector.load %arg3[%c0_3, %c0_4] : memref<36x512xbf16, #tpu.memory_space<vmem>>, vector<36x512xbf16>
    tpu.vector_store %arg3[%c0_3, %c0_4], %3 {strides = array<i32>} : memref<36x512xbf16, #tpu.memory_space<vmem>>, vector<36x512xbf16>,
    return
  }
  func.func @transform_0(%arg0: i32) -> (i32, i32) {
    %c0_i32 = arith.constant 0 : i32
    %c0_i32_0 = arith.constant 0 : i32
    return %c0_i32, %arg0 : i32, i32
  }
  func.func @transform_1(%arg0: i32) -> (i32, i32) {
    %c0_i32 = arith.constant 0 : i32
    %c0_i32_0 = arith.constant 0 : i32
    %c0_i32_1 = arith.constant 0 : i32
    return %c0_i32, %c0_i32_0 : i32, i32
  }
  func.func @transform_2(%arg0: i32) -> (i32, i32) {
    %c0_i32 = arith.constant 0 : i32
    %c0_i32_0 = arith.constant 0 : i32
    return %c0_i32, %arg0 : i32, i32
  }
}

module attributes {stable_mosaic.version = 11 : i64} {
  func.func @_convbn_kernel(%arg0: i32, %arg1: memref<325x256xbf16, #tpu.memory_space<vmem>>, %arg2: memref<72x325xbf16, #tpu.memory_space<vmem>>, %arg3: memref<72x256xf32, #tpu.memory_space<vmem>>) attributes {dimension_semantics = [#tpu.dimension_semantics<parallel>], iteration_bounds = array<i64: 2>, scalar_prefetch = 0 : i64, scratch_operands = 0 : i64, tpu.core_type = #tpu.core_type<tc>, window_params = [{transform_indices = @transform_0, window_bounds = array<i64: 325, 256>}, {pipeline_mode = #tpu.pipeline_mode<synchronous>, transform_indices = @transform_1, window_bounds = array<i64: 72, 325>}, {transform_indices = @transform_2, window_bounds = array<i64: 72, 256>}]} {
    %c0 = arith.constant 0 : index
    %c0_0 = arith.constant 0 : index
    %0 = vector.load %arg2[%c0, %c0_0] : memref<72x325xbf16, #tpu.memory_space<vmem>>, vector<72x325xbf16>
    %c0_1 = arith.constant 0 : index
    %c0_2 = arith.constant 0 : index
    %1 = vector.load %arg1[%c0_1, %c0_2] : memref<325x256xbf16, #tpu.memory_space<vmem>>, vector<325x256xbf16>
    %cst = arith.constant dense<0.000000e+00> : vector<72x256xf32>
    %2 = tpu.matmul %0, %1, %cst {dimension_numbers = #tpu.dot_dimension_numbers<[1], [0], [0], [1], [0, 0, 1, 1], [], []>} : vector<72x325xbf16>, vector<325x256xbf16>, vector<72x256xf32> -> vector<72x256xf32>
    %c0_3 = arith.constant 0 : index
    %c0_4 = arith.constant 0 : index
    %3 = vector.load %arg3[%c0_3, %c0_4] : memref<72x256xf32, #tpu.memory_space<vmem>>, vector<72x256xf32>
    tpu.vector_store %arg3[%c0_3, %c0_4], %2 {strides = array<i32>} : memref<72x256xf32, #tpu.memory_space<vmem>>, vector<72x256xf32>,
    return
  }
  func.func @transform_0(%arg0: i32) -> (i32, i32) {
    %c0_i32 = arith.constant 0 : i32
    %c0_i32_0 = arith.constant 0 : i32
    return %c0_i32, %arg0 : i32, i32
  }
  func.func @transform_1(%arg0: i32) -> (i32, i32) {
    %c0_i32 = arith.constant 0 : i32
    %c0_i32_0 = arith.constant 0 : i32
    %c0_i32_1 = arith.constant 0 : i32
    return %c0_i32, %c0_i32_0 : i32, i32
  }
  func.func @transform_2(%arg0: i32) -> (i32, i32) {
    %c0_i32 = arith.constant 0 : i32
    %c0_i32_0 = arith.constant 0 : i32
    return %c0_i32, %arg0 : i32, i32
  }
}

module attributes {stable_mosaic.version = 11 : i64} {
  func.func @_dcn_kernel(%arg0: i32, %arg1: memref<72x256xbf16, #tpu.memory_space<vmem>>, %arg2: memref<8x72xbf16, #tpu.memory_space<vmem>>, %arg3: memref<8x256xf32, #tpu.memory_space<vmem>>) attributes {dimension_semantics = [#tpu.dimension_semantics<parallel>], iteration_bounds = array<i64: 2>, scalar_prefetch = 0 : i64, scratch_operands = 0 : i64, tpu.core_type = #tpu.core_type<tc>, window_params = [{transform_indices = @transform_0, window_bounds = array<i64: 72, 256>}, {pipeline_mode = #tpu.pipeline_mode<synchronous>, transform_indices = @transform_1, window_bounds = array<i64: 8, 72>}, {transform_indices = @transform_2, window_bounds = array<i64: 8, 256>}]} {
    %c0 = arith.constant 0 : index
    %c0_0 = arith.constant 0 : index
    %0 = vector.load %arg2[%c0, %c0_0] : memref<8x72xbf16, #tpu.memory_space<vmem>>, vector<8x72xbf16>
    %c0_1 = arith.constant 0 : index
    %c0_2 = arith.constant 0 : index
    %1 = vector.load %arg1[%c0_1, %c0_2] : memref<72x256xbf16, #tpu.memory_space<vmem>>, vector<72x256xbf16>
    %cst = arith.constant dense<0.000000e+00> : vector<8x256xf32>
    %2 = tpu.matmul %0, %1, %cst {dimension_numbers = #tpu.dot_dimension_numbers<[1], [0], [0], [1], [0, 0, 1, 1], [], []>} : vector<8x72xbf16>, vector<72x256xbf16>, vector<8x256xf32> -> vector<8x256xf32>
    %cst_3 = arith.constant 0.000000e+00 : f32
    %3 = vector.broadcast %cst_3 : f32 to vector<8x256xf32>
    %4 = arith.maximumf %2, %3 : vector<8x256xf32>
    %c0_4 = arith.constant 0 : index
    %c0_5 = arith.constant 0 : index
    %5 = vector.load %arg3[%c0_4, %c0_5] : memref<8x256xf32, #tpu.memory_space<vmem>>, vector<8x256xf32>
    tpu.vector_store %arg3[%c0_4, %c0_5], %4 {strides = array<i32>} : memref<8x256xf32, #tpu.memory_space<vmem>>, vector<8x256xf32>,
    return
  }
  func.func @transform_0(%arg0: i32) -> (i32, i32) {
    %c0_i32 = arith.constant 0 : i32
    %c0_i32_0 = arith.constant 0 : i32
    return %c0_i32, %arg0 : i32, i32
  }
  func.func @transform_1(%arg0: i32) -> (i32, i32) {
    %c0_i32 = arith.constant 0 : i32
    %c0_i32_0 = arith.constant 0 : i32
    %c0_i32_1 = arith.constant 0 : i32
    return %c0_i32, %c0_i32_0 : i32, i32
  }
  func.func @transform_2(%arg0: i32) -> (i32, i32) {
    %c0_i32 = arith.constant 0 : i32
    %c0_i32_0 = arith.constant 0 : i32
    return %c0_i32, %arg0 : i32, i32
  }
}

</mosaic_0001>

<llo_original>
// kernel: alau_forward.3
$region0: #{alau_forward.3}
  #allocation0 [shape = 'u32[]', space=smem, size = 0x4, offset = 0x4, fixed_abs, tag = 'smem constant byte address 0x4 - core index']
  #allocation1 [shape = 'u32[144,128]{1,0:T(1,128)}', space=vmem, size = 0x12000, scoped, tag = 'internal scratch']
  %s0 = inlined_call_operand.vmem [shape: bf16[19,2048], index: 0, kind: input, shape index: {}]
  %s1 = inlined_call_operand.vmem [shape: bf16[36,19], index: 1, kind: input, shape index: {}]
  %s2 = inlined_call_operand.vmem [shape: bf16[36,2048], index: 2, kind: output, shape index: {}]
  %s3 = sld [smem:[#allocation0]]
  $region83: #{alau_forward.3} parent=0
    _
  %s5 = ssub.s32 1, %s3
  %s6 = scalar_select 0, %s5, %s3
  $region1: #{alau_forward.3} parent=0
    #allocation2 [shape = 'u8[49152]{0}', space=vmem, size = 0xc000, scoped, tag = 'input window, operand 0']
    #allocation3 [shape = 'u8[81920]{0}', space=vmem, size = 0x14000, scoped, tag = 'output window, operand 0']
    loop: start=0, step=1, limit=6
    $region2: #{alau_forward.3} parent=1 // loop_pre_header
      _
    $region3: #{alau_forward.3} parent=1 // loop_header
      %s8 = sphi 0, %s12
      %p9 = scmp.ge.s32.totalorder %s8, 6
      %s18 = sphi 0, %s20
      %s21 = sphi 0, %s18
      %s22 = sphi 0, %s21
      %s38 = sphi 0, %s22
      %s42 = sphi 0, %s42
      %s44 = sphi 0, %s42
      %s45 = sphi 0, %s44
      %s59 = sphi 0, %s45
      %s65 = sphi 0, %s67
      %s68 = sphi 0, %s65
      %s69 = sphi 0, %s68
      %s85 = sphi 0, %s69
    $region4: #{alau_forward.3} parent=1 // loop_header_branch
      %11 = sbr.rel (%p9) target = $region8
    $region5: #{alau_forward.3} parent=1 // loop_body
      %s13 = ssub.s32 %s8, 1
      %s14 = ssub.s32 %s8, 2
      %s15 = sadd.s32 %s8, 1
      %s16 = ssub.s32 %s8, %s15
      %p17 = scmp.eq.s32.totalorder %s16, 0
      %s19 = sadd.s32 %s18, 1
      %s20 = scalar_select %p17, %s18, %s19
      %p23 = pneg %p17
      %p24 = scmp.eq.s32.totalorder %s8, 3
      %p25 = por %p23, %p24
      %p26 = scmp.ne.s32.totalorder %s18, %s21
      %p27 = scmp.eq.s32.totalorder %s8, 0
      %p28 = por %p26, %p27
      %p29 = scmp.ne.s32.totalorder %s18, %s21
      %p30 = scmp.eq.s32.totalorder %s13, 3
      %p31 = por %p29, %p30
      %p32 = scmp.ne.s32.totalorder %s21, %s22
      %p33 = scmp.eq.s32.totalorder %s13, 0
      %p34 = por %p32, %p33
      %p35 = scmp.ne.s32.totalorder %s21, %s22
      %p36 = scmp.eq.s32.totalorder %s14, 3
      %p37 = por %p35, %p36
      %p39 = scmp.ne.s32.totalorder %s22, %s38
      %p40 = scmp.eq.s32.totalorder %s14, 0
      %p41 = por %p39, %p40
      %s43 = sadd.s32 %s42, 1
      %p46 = scmp.eq.s32.totalorder %s8, 3
      %p47 = scmp.ne.s32.totalorder %s42, %s44
      %p48 = scmp.eq.s32.totalorder %s8, 0
      %p49 = por %p47, %p48
      %p50 = scmp.ne.s32.totalorder %s42, %s44
      %p51 = scmp.eq.s32.totalorder %s13, 3
      %p52 = por %p50, %p51
      %p53 = scmp.ne.s32.totalorder %s44, %s45
      %p54 = scmp.eq.s32.totalorder %s13, 0
      %p55 = por %p53, %p54
      %p56 = scmp.ne.s32.totalorder %s44, %s45
      %p57 = scmp.eq.s32.totalorder %s14, 3
      %p58 = por %p56, %p57
      %p60 = scmp.ne.s32.totalorder %s45, %s59
      %p61 = scmp.eq.s32.totalorder %s14, 0
      %p62 = por %p60, %p61
      %s63 = ssub.s32 %s8, %s15
      %p64 = scmp.eq.s32.totalorder %s63, 0
      %s66 = sadd.s32 %s65, 1
      %s67 = scalar_select %p64, %s65, %s66
      %p70 = pneg %p64
      %p71 = scmp.eq.s32.totalorder %s8, 3
      %p72 = por %p70, %p71
      %p73 = scmp.ne.s32.totalorder %s65, %s68
      %p74 = scmp.eq.s32.totalorder %s8, 0
      %p75 = por %p73, %p74
      %p76 = scmp.ne.s32.totalorder %s65, %s68
      %p77 = scmp.eq.s32.totalorder %s13, 3
      %p78 = por %p76, %p77
      %p79 = scmp.ne.s32.totalorder %s68, %s69
      %p80 = scmp.eq.s32.totalorder %s13, 0
      %p81 = por %p79, %p80
      %p82 = scmp.ne.s32.totalorder %s68, %s69
      %p83 = scmp.eq.s32.totalorder %s14, 3
      %p84 = por %p82, %p83
      %p86 = scmp.ne.s32.totalorder %s69, %s85
      %p87 = scmp.eq.s32.totalorder %s14, 0
      %p88 = por %p86, %p87
      %p89 = scmp.le.s32.totalorder 1, %s8
      %p90 = scmp.lt.s32.totalorder %s8, 5
      %p91 = pnand %p89, %p90
      %p92 = pneg %p91
      // Predicated region
      $region9: #{alau_forward.3} parent=5 // pred_check
        _
      $region10: #{alau_forward.3} parent=5 // pred_check_branch
        %94 = sbr.rel (%p91) target = $region12
      $region11: #{alau_forward.3} parent=5 // pred_region
        %s95 = ssub.s32 %s8, 1
        // Predicated region
        $region13: #{alau_forward.3} parent=11 // pred_check
          %p96 = pneg %p55
        $region14: #{alau_forward.3} parent=11 // pred_check_branch
          %98 = sbr.rel (%p96) target = $region16
        $region15: #{alau_forward.3} parent=11 // pred_region
          _
        $region16: #{alau_forward.3} parent=11 // pred_fallthru
          _
      $region12: #{alau_forward.3} parent=5 // pred_fallthru
        _
      %p99 = scmp.lt.s32.totalorder %s8, 4
      // Predicated region
      $region17: #{alau_forward.3} parent=5 // pred_check
        %p100 = pneg %p99
      $region18: #{alau_forward.3} parent=5 // pred_check_branch
        %102 = sbr.rel (%p100) target = $region20
      $region19: #{alau_forward.3} parent=5 // pred_region
        // Predicated region
        $region21: #{alau_forward.3} parent=19 // pred_check
          %p103 = pneg %p28
        $region22: #{alau_forward.3} parent=19 // pred_check_branch
          %105 = sbr.rel (%p103) target = $region24
        $region23: #{alau_forward.3} parent=19 // pred_region
          %s106 = sand.u32 %s18, 1
          %s107 = sand.u32 %s18, 1
          %s108 = smul.addr %s107, 48
          %s109 = scalar_lea.vmem [#allocation2], %s108
          %s110 = smul.u32 4, %s8
          %s111 = smul.addr %s110, 4
          %s112 = scalar_lea.vmem %s0, %s111
          // Predicated region
          $region25: #{alau_forward.3} parent=23 // pred_check
            _
          $region26: #{alau_forward.3} parent=23 // pred_check_branch
            %114 = sbr.rel (0) target = $region28
          $region27: #{alau_forward.3} parent=23 // pred_region
            // Predicated region
            $region29: #{alau_forward.3} parent=27 // pred_check
              _
            $region30: #{alau_forward.3} parent=27 // pred_check_branch
              %116 = sbr.rel (0) target = $region32
            $region31: #{alau_forward.3} parent=27 // pred_region
              loop: start=0, step=1, limit=1
              $region33: #{alau_forward.3} parent=31 // loop_pre_header
                _
              $region34: #{alau_forward.3} parent=31 // loop_header
                %s118 = sphi 0, %s122
                %p119 = scmp.ge.s32.totalorder %s118, 1
                %s123 = sphi %s112, %s112
                %s124 = sphi %s109, %s109
              $region35: #{alau_forward.3} parent=31 // loop_header_branch
                %121 = sbr.rel (%p119) target = $region39
              $region36: #{alau_forward.3} parent=31 // loop_body
                %v125 = vld [vmem:[%s123] sm:$0xff]
                %126 = vst [vmem:[%s124] sm:$0xff] %v125
                %v127 = vld [vmem:[%s123 + $0x8] sm:$0xff]
                %128 = vst [vmem:[%s124 + $0x8] sm:$0xff] %v127
                %v129 = vld [vmem:[%s123 + $0x40] sm:$0xff]
                %130 = vst [vmem:[%s124 + $0x10] sm:$0xff] %v129
                %v131 = vld [vmem:[%s123 + $0x48] sm:$0xff]
                %132 = vst [vmem:[%s124 + $0x18] sm:$0xff] %v131
                %v133 = vld [vmem:[%s123 + $0x80] sm:$0xff]
                %134 = vst [vmem:[%s124 + $0x20] sm:$0xff] %v133
                %v135 = vld [vmem:[%s123 + $0x88] sm:$0xff]
                %136 = vst [vmem:[%s124 + $0x28] sm:$0xff] %v135
              $region37: #{alau_forward.3} parent=31 // loop_footer
                %s122 = sadd.s32 1, %s118
              $region38: #{alau_forward.3} parent=31 // loop_footer_branch
                %117 = sbr.rel target = $region34
              $region39: #{alau_forward.3} parent=31 // loop_exit
                _
            $region32: #{alau_forward.3} parent=27 // pred_fallthru
              _
            // Predicated region
            $region40: #{alau_forward.3} parent=27 // pred_check
              _
            $region41: #{alau_forward.3} parent=27 // pred_check_branch
              %138 = sbr.rel target = $region43
            $region42: #{alau_forward.3} parent=27 // pred_region
              _
            $region43: #{alau_forward.3} parent=27 // pred_fallthru
              _
          $region28: #{alau_forward.3} parent=23 // pred_fallthru
            _
          %139 = vnop
        $region24: #{alau_forward.3} parent=19 // pred_fallthru
          _
      $region20: #{alau_forward.3} parent=5 // pred_fallthru
        _
      %p140 = scmp.le.s32.totalorder 1, %s8
      %p141 = scmp.lt.s32.totalorder %s8, 5
      %p142 = pnand %p140, %p141
      %p143 = pneg %p142
      // Predicated region
      $region44: #{alau_forward.3} parent=5 // pred_check
        _
      $region45: #{alau_forward.3} parent=5 // pred_check_branch
        %145 = sbr.rel (%p142) target = $region47
      $region46: #{alau_forward.3} parent=5 // pred_region
        %s146 = ssub.s32 %s8, 1
        %s147 = sand.u32 %s21, 1
        %s148 = sand.u32 %s21, 1
        %s149 = smul.addr %s148, 48
        %s150 = scalar_lea.vmem [#allocation2], %s149
        // Predicated region
        $region48: #{alau_forward.3} parent=46 // pred_check
          %p151 = pneg %p34
        $region49: #{alau_forward.3} parent=46 // pred_check_branch
          %153 = sbr.rel (%p151) target = $region51
        $region50: #{alau_forward.3} parent=46 // pred_region
          _
        $region51: #{alau_forward.3} parent=46 // pred_fallthru
          _
        %s154 = sand.u32 %s21, 1
        %s155 = sand.u32 %s21, 1
        %s156 = smul.addr %s155, 48
        %s157 = scalar_lea.vmem [#allocation2], %s156
        %p158 = pneg %p34
        %p159 = pneg %p31
        %p160 = pneg %p55
        %p161 = pneg %p52
        %p162 = pneg %p81
        %p163 = pneg %p78
        %s164 = sand.u32 %s68, 1
        %s165 = sand.u32 %s68, 1
        %s166 = smul.addr %s165, 80
        %s167 = scalar_lea.vmem [#allocation3], %s166
        %s168 = smul.u32 4, %s13
        %s169 = smul.u32 4, %s13
        %v171 = vld [vmem:[%s1] sm:$0xf]
        %v172 = vld [vmem:[%s1 + $0x4] sm:$0xf]
        %v173 = vld [vmem:[%s1 + $0x8] sm:$0xf]
        %v174 = vld [vmem:[%s1 + $0xc] sm:$0xf]
        %v175 = vld [vmem:[%s1 + $0x10] sm:$0x3]
        %v176 = vld [vmem:[%s150] sm:$0xff]
        %v177 = vld [vmem:[%s150 + $0x8] sm:$0xff]
        %v178 = vld [vmem:[%s150 + $0x10] sm:$0xff]
        %v179 = vld [vmem:[%s150 + $0x18] sm:$0xff]
        %v180 = vld [vmem:[%s150 + $0x20] sm:$0x33]
        %v181 = vld [vmem:[%s150 + $0x28] sm:$0x33]
        %v187 = vunpack.c.l.b16 %v171
        %v188 = vunpack.c.l.b16 %v172
        %v189 = vunpack.c.l.b16 %v173
        %v190 = vunpack.c.l.b16 %v174
        %v191 = vunpack.c.l.b16 %v175
        %v192 = vpack.c.b16 %v188, %v187
        %v193 = vpack.c.b16 %v190, %v189
        %v194 = vpack.c.b16 %v191, %v191
        %v201 = vunpack.c.l.b16 %v176
        %v202 = vunpack.c.h.b16 %v176
        %v203 = vunpack.c.l.b16 %v177
        %v204 = vunpack.c.h.b16 %v177
        %v205 = vunpack.c.l.b16 %v178
        %v206 = vunpack.c.h.b16 %v178
        %v207 = vunpack.c.l.b16 %v179
        %v208 = vunpack.c.h.b16 %v179
        %v209 = vunpack.c.l.b16 %v180
        %v210 = vunpack.c.h.b16 %v180
        %v211 = vunpack.c.l.b16 %v181
        %v212 = vunpack.c.h.b16 %v181
        %v213 = vpack.c.b16 %v205, %v201
        %v214 = vpack.c.b16 %v206, %v202
        %v215 = vpack.c.b16 %v207, %v203
        %v216 = vpack.c.b16 %v208, %v204
        %v217 = vpack.c.b16 %v209, %v209
        %v218 = vpack.c.b16 %v210, %v210
        %v219 = vpack.c.b16 %v211, %v211
        %v220 = vpack.c.b16 %v212, %v212
        %vm225 = vcmask 154624
        %v227 = vsel %vm225, %v192, 0
        %v230 = vsel %vm225, %v193, 0
        %v233 = vsel %vm225, %v194, 0
        %vm235 = vcmask 1040384
        %vm236 = vcmask 1041408
        %v237 = vsel %vm235, 4294967295, 65535
        %v238 = vsel %vm236, %v237, 0
        %v240 = vand.u32 %v217, %v238
        %v243 = vand.u32 %v218, %v238
        %v246 = vand.u32 %v219, %v238
        %v249 = vand.u32 %v220, %v238
        %251 = vmatprep.subr.bf16.mxu0 0
        %252 = vmatpush1.bf16.msra.mxu0 0
        %253 = vmatprep.subr.bf16.mxu0 0
        %254 = vmatpush1.bf16.msra.mxu0 0
        %255 = vmatprep.subr.bf16.mxu0 0
        %256 = vmatpush1.bf16.msra.mxu0 0
        %257 = vmatprep.subr.bf16.mxu0 0
        %258 = vmatpush1.bf16.msra.mxu0 0
        %259 = vmatprep.subr.bf16.mxu0 0
        %260 = vmatpush1.bf16.msra.mxu0 0
        %261 = vmatprep.subr.bf16.mxu0 0
        %262 = vmatpush1.bf16.msra.mxu0 0
        %263 = vmatprep.subr.bf16.mxu0 %v243
        %264 = vmatpush1.bf16.msra.mxu0 %v240
        %265 = vmatprep.subr.bf16.mxu0 %v214
        %266 = vmatpush1.bf16.msra.mxu0 %v213
        %267 = vmatprep.subr.bf16.mxu0 0
        %268 = vmatpush2.bf16.msra.mxu0 0
        %269 = vmatprep.subr.bf16.mxu0 0
        %270 = vmatpush2.bf16.msra.mxu0 0
        %271 = vmatprep.subr.bf16.mxu0 0
        %272 = vmatpush2.bf16.msra.mxu0 0
        %273 = vmatprep.subr.bf16.mxu0 0
        %274 = vmatpush2.bf16.msra.mxu0 0
        %275 = vmatprep.subr.bf16.mxu0 0
        %276 = vmatpush2.bf16.msra.mxu0 0
        %277 = vmatprep.subr.bf16.mxu0 0
        %278 = vmatpush2.bf16.msra.mxu0 0
        %279 = vmatprep.subr.bf16.mxu0 0
        %280 = vmatpush2.bf16.msra.mxu0 0
        %281 = vmatprep.subr.bf16.mxu0 0
        %282 = vmatpush2.bf16.msra.mxu0 0
        %283 = vmatprep.mubr.bf16.mxu0 0
        %284 = vmatmul.mubr.bf16.gmra.mxu0 %v227
        %v285 = vpop.f32.mrf.mxu0
        %v286 = vadd.f32 0.0, %v285
        %v287 = vpop.f32.mrf.mxu0
        %v288 = vadd.f32 0.0, %v287
        %v289 = vpop.f32.mrf.mxu0
        %v290 = vadd.f32 0.0, %v289
        %v291 = vpop.f32.mrf.mxu0
        %v292 = vadd.f32 0.0, %v291
        %293 = vmatprep.mubr.bf16.mxu0 0
        %294 = vmatmul.mubr.bf16.gmra.mxu0 %v230
        %v295 = vpop.f32.mrf.mxu0
        %v296 = vadd.f32 0.0, %v295
        %v297 = vpop.f32.mrf.mxu0
        %v298 = vadd.f32 0.0, %v297
        %v299 = vpop.f32.mrf.mxu0
        %v300 = vadd.f32 0.0, %v299
        %v301 = vpop.f32.mrf.mxu0
        %v302 = vadd.f32 0.0, %v301
        %303 = vmatprep.mubr.bf16.mxu0 0
        %304 = vmatmul.mubr.bf16.gmra.mxu0 %v233
        %v305 = vpop.f32.mrf.mxu0
        %v306 = vadd.f32 0.0, %v305
        %v307 = vpop.f32.mrf.mxu0
        %v308 = vadd.f32 0.0, %v307
        %v309 = vpop.f32.mrf.mxu0
        %v310 = vpop.f32.mrf.mxu0
        %311 = vdwg.mxu0
        %312 = vmatprep.subr.bf16.mxu0 0
        %313 = vmatpush1.bf16.msra.mxu0 0
        %314 = vmatprep.subr.bf16.mxu0 0
        %315 = vmatpush1.bf16.msra.mxu0 0
        %316 = vmatprep.subr.bf16.mxu0 0
        %317 = vmatpush1.bf16.msra.mxu0 0
        %318 = vmatprep.subr.bf16.mxu0 0
        %319 = vmatpush1.bf16.msra.mxu0 0
        %320 = vmatprep.subr.bf16.mxu0 0
        %321 = vmatpush1.bf16.msra.mxu0 0
        %322 = vmatprep.subr.bf16.mxu0 0
        %323 = vmatpush1.bf16.msra.mxu0 0
        %324 = vmatprep.subr.bf16.mxu0 %v249
        %325 = vmatpush1.bf16.msra.mxu0 %v246
        %326 = vmatprep.subr.bf16.mxu0 %v216
        %327 = vmatpush1.bf16.msra.mxu0 %v215
        %328 = vmatprep.subr.bf16.mxu0 0
        %329 = vmatpush2.bf16.msra.mxu0 0
        %330 = vmatprep.subr.bf16.mxu0 0
        %331 = vmatpush2.bf16.msra.mxu0 0
        %332 = vmatprep.subr.bf16.mxu0 0
        %333 = vmatpush2.bf16.msra.mxu0 0
        %334 = vmatprep.subr.bf16.mxu0 0
        %335 = vmatpush2.bf16.msra.mxu0 0
        %336 = vmatprep.subr.bf16.mxu0 0
        %337 = vmatpush2.bf16.msra.mxu0 0
        %338 = vmatprep.subr.bf16.mxu0 0
        %339 = vmatpush2.bf16.msra.mxu0 0
        %340 = vmatprep.subr.bf16.mxu0 0
        %341 = vmatpush2.bf16.msra.mxu0 0
        %342 = vmatprep.subr.bf16.mxu0 0
        %343 = vmatpush2.bf16.msra.mxu0 0
        %344 = vmatprep.mubr.bf16.mxu0 0
        %345 = vmatmul.mubr.bf16.gmra.mxu0 %v227
        %v346 = vpop.f32.mrf.mxu0
        %v347 = vadd.f32 0.0, %v346
        %v348 = vpop.f32.mrf.mxu0
        %v349 = vadd.f32 0.0, %v348
        %v350 = vpop.f32.mrf.mxu0
        %v351 = vadd.f32 0.0, %v350
        %v352 = vpop.f32.mrf.mxu0
        %v353 = vadd.f32 0.0, %v352
        %354 = vmatprep.mubr.bf16.mxu0 0
        %355 = vmatmul.mubr.bf16.gmra.mxu0 %v230
        %v356 = vpop.f32.mrf.mxu0
        %v357 = vadd.f32 0.0, %v356
        %v358 = vpop.f32.mrf.mxu0
        %v359 = vadd.f32 0.0, %v358
        %v360 = vpop.f32.mrf.mxu0
        %v361 = vadd.f32 0.0, %v360
        %v362 = vpop.f32.mrf.mxu0
        %v363 = vadd.f32 0.0, %v362
        %364 = vmatprep.mubr.bf16.mxu0 0
        %365 = vmatmul.mubr.bf16.gmra.mxu0 %v233
        %v366 = vpop.f32.mrf.mxu0
        %v367 = vadd.f32 0.0, %v366
        %v368 = vpop.f32.mrf.mxu0
        %v369 = vadd.f32 0.0, %v368
        %v370 = vpop.f32.mrf.mxu0
        %v371 = vpop.f32.mrf.mxu0
        %372 = vdwg.mxu0
        %v373 = vpack.c.bf16 %v290, %v286
        %v374 = vpack.c.bf16 %v292, %v288
        %v375 = vpack.c.bf16 %v351, %v347
        %v376 = vpack.c.bf16 %v353, %v349
        %v377 = vpack.c.bf16 %v300, %v296
        %v378 = vpack.c.bf16 %v302, %v298
        %v379 = vpack.c.bf16 %v361, %v357
        %v380 = vpack.c.bf16 %v363, %v359
        %v381 = vpack.c.bf16 %v306, %v306
        %v382 = vpack.c.bf16 %v308, %v308
        %v383 = vpack.c.bf16 %v367, %v367
        %v384 = vpack.c.bf16 %v369, %v369
        %v397 = vunpack.c.l.b16 %v373
        %v398 = vunpack.c.l.b16 %v374
        %v399 = vunpack.c.l.b16 %v375
        %v400 = vunpack.c.l.b16 %v376
        %v401 = vunpack.c.h.b16 %v373
        %v402 = vunpack.c.h.b16 %v374
        %v403 = vunpack.c.h.b16 %v375
        %v404 = vunpack.c.h.b16 %v376
        %v405 = vunpack.c.l.b16 %v377
        %v406 = vunpack.c.l.b16 %v378
        %v407 = vunpack.c.l.b16 %v379
        %v408 = vunpack.c.l.b16 %v380
        %v409 = vunpack.c.h.b16 %v377
        %v410 = vunpack.c.h.b16 %v378
        %v411 = vunpack.c.h.b16 %v379
        %v412 = vunpack.c.h.b16 %v380
        %v413 = vunpack.c.l.b16 %v381
        %v414 = vunpack.c.l.b16 %v382
        %v415 = vunpack.c.l.b16 %v383
        %v416 = vunpack.c.l.b16 %v384
        %v417 = vpack.c.b16 %v398, %v397
        %v418 = vpack.c.b16 %v400, %v399
        %v419 = vpack.c.b16 %v402, %v401
        %v420 = vpack.c.b16 %v404, %v403
        %v421 = vpack.c.b16 %v406, %v405
        %v422 = vpack.c.b16 %v408, %v407
        %v423 = vpack.c.b16 %v410, %v409
        %v424 = vpack.c.b16 %v412, %v411
        %v425 = vpack.c.b16 %v414, %v413
        %v426 = vpack.c.b16 %v416, %v415
        %437 = vst [vmem:[%s167] sm:$0xff] %v417
        %438 = vst [vmem:[%s167 + $0x8] sm:$0xff] %v418
        %439 = vst [vmem:[%s167 + $0x10] sm:$0xff] %v419
        %440 = vst [vmem:[%s167 + $0x18] sm:$0xff] %v420
        %441 = vst [vmem:[%s167 + $0x20] sm:$0xff] %v421
        %442 = vst [vmem:[%s167 + $0x28] sm:$0xff] %v422
        %443 = vst [vmem:[%s167 + $0x30] sm:$0xff] %v423
        %444 = vst [vmem:[%s167 + $0x38] sm:$0xff] %v424
        %445 = vst [vmem:[%s167 + $0x40] sm:$0x33] %v425
        %446 = vst [vmem:[%s167 + $0x48] sm:$0x33] %v426
        %s447 = sand.u32 %s68, 1
        %s448 = sand.u32 %s68, 1
        %s449 = smul.addr %s448, 80
        %s450 = scalar_lea.vmem [#allocation3], %s449
        // Predicated region
        $region52: #{alau_forward.3} parent=46 // pred_check
          %p451 = pneg %p78
        $region53: #{alau_forward.3} parent=46 // pred_check_branch
          %453 = sbr.rel (%p451) target = $region55
        $region54: #{alau_forward.3} parent=46 // pred_region
          %s454 = smul.u32 4, %s13
          %s455 = smul.addr %s454, 4
          %s456 = scalar_lea.vmem %s2, %s455
          // Predicated region
          $region56: #{alau_forward.3} parent=54 // pred_check
            _
          $region57: #{alau_forward.3} parent=54 // pred_check_branch
            %458 = sbr.rel (0) target = $region59
          $region58: #{alau_forward.3} parent=54 // pred_region
            // Predicated region
            $region60: #{alau_forward.3} parent=58 // pred_check
              _
            $region61: #{alau_forward.3} parent=58 // pred_check_branch
              %460 = sbr.rel (0) target = $region63
            $region62: #{alau_forward.3} parent=58 // pred_region
              loop: start=0, step=1, limit=1
              $region64: #{alau_forward.3} parent=62 // loop_pre_header
                _
              $region65: #{alau_forward.3} parent=62 // loop_header
                %s462 = sphi 0, %s466
                %p463 = scmp.ge.s32.totalorder %s462, 1
                %s467 = sphi %s450, %s450
                %s468 = sphi %s456, %s456
              $region66: #{alau_forward.3} parent=62 // loop_header_branch
                %465 = sbr.rel (%p463) target = $region70
              $region67: #{alau_forward.3} parent=62 // loop_body
                %v469 = vld [vmem:[%s467] sm:$0xff]
                %470 = vst [vmem:[%s468] sm:$0xff] %v469
                %v471 = vld [vmem:[%s467 + $0x8] sm:$0xff]
                %472 = vst [vmem:[%s468 + $0x8] sm:$0xff] %v471
                %v473 = vld [vmem:[%s467 + $0x10] sm:$0xff]
                %474 = vst [vmem:[%s468 + $0x40] sm:$0xff] %v473
                %v475 = vld [vmem:[%s467 + $0x18] sm:$0xff]
                %476 = vst [vmem:[%s468 + $0x48] sm:$0xff] %v475
                %v477 = vld [vmem:[%s467 + $0x20] sm:$0xff]
                %478 = vst [vmem:[%s468 + $0x80] sm:$0xff] %v477
                %v479 = vld [vmem:[%s467 + $0x28] sm:$0xff]
                %480 = vst [vmem:[%s468 + $0x88] sm:$0xff] %v479
                %v481 = vld [vmem:[%s467 + $0x30] sm:$0xff]
                %482 = vst [vmem:[%s468 + $0xc0] sm:$0xff] %v481
                %v483 = vld [vmem:[%s467 + $0x38] sm:$0xff]
                %484 = vst [vmem:[%s468 + $0xc8] sm:$0xff] %v483
                %v485 = vld [vmem:[%s467 + $0x40] sm:$0xff]
                %486 = vst [vmem:[%s468 + $0x100] sm:$0xff] %v485
                %v487 = vld [vmem:[%s467 + $0x48] sm:$0xff]
                %488 = vst [vmem:[%s468 + $0x108] sm:$0xff] %v487
              $region68: #{alau_forward.3} parent=62 // loop_footer
                %s466 = sadd.s32 1, %s462
              $region69: #{alau_forward.3} parent=62 // loop_footer_branch
                %461 = sbr.rel target = $region65
              $region70: #{alau_forward.3} parent=62 // loop_exit
                _
            $region63: #{alau_forward.3} parent=58 // pred_fallthru
              _
            // Predicated region
            $region71: #{alau_forward.3} parent=58 // pred_check
              _
            $region72: #{alau_forward.3} parent=58 // pred_check_branch
              %490 = sbr.rel target = $region74
            $region73: #{alau_forward.3} parent=58 // pred_region
              _
            $region74: #{alau_forward.3} parent=58 // pred_fallthru
              _
          $region59: #{alau_forward.3} parent=54 // pred_fallthru
            _
          %491 = vnop
        $region55: #{alau_forward.3} parent=46 // pred_fallthru
          _
      $region47: #{alau_forward.3} parent=5 // pred_fallthru
        _
      %p492 = scmp.le.s32.totalorder 2, %s8
      // Predicated region
      $region75: #{alau_forward.3} parent=5 // pred_check
        %p493 = pneg %p492
      $region76: #{alau_forward.3} parent=5 // pred_check_branch
        %495 = sbr.rel (%p493) target = $region78
      $region77: #{alau_forward.3} parent=5 // pred_region
        %s496 = ssub.s32 %s8, 2
        // Predicated region
        $region79: #{alau_forward.3} parent=77 // pred_check
          %p497 = pneg %p84
        $region80: #{alau_forward.3} parent=77 // pred_check_branch
          %499 = sbr.rel (%p497) target = $region82
        $region81: #{alau_forward.3} parent=77 // pred_region
          %s500 = sand.u32 %s69, 1
          %s501 = sand.u32 %s69, 1
          %s502 = smul.addr %s501, 80
          %s503 = scalar_lea.vmem [#allocation3], %s502
        $region82: #{alau_forward.3} parent=77 // pred_fallthru
          _
      $region78: #{alau_forward.3} parent=5 // pred_fallthru
        _
    $region6: #{alau_forward.3} parent=1 // loop_footer
      %s12 = sadd.s32 1, %s8
    $region7: #{alau_forward.3} parent=1 // loop_footer_branch
      %7 = sbr.rel target = $region3
    $region8: #{alau_forward.3} parent=1 // loop_exit
      _

// kernel: alau_forward.4
$region0: #{alau_forward.4}
  #allocation0 [shape = 'u32[]', space=smem, size = 0x4, offset = 0x4, fixed_abs, tag = 'smem constant byte address 0x4 - core index']
  #allocation1 [shape = 'u32[144,128]{1,0:T(1,128)}', space=vmem, size = 0x12000, scoped, tag = 'internal scratch']
  %s0 = inlined_call_operand.vmem [shape: bf16[325,512], index: 0, kind: input, shape index: {}]
  %s1 = inlined_call_operand.vmem [shape: bf16[72,325], index: 1, kind: input, shape index: {}]
  %s2 = inlined_call_operand.vmem [shape: f32[72,512], index: 2, kind: output, shape index: {}]
  %s3 = sld [smem:[#allocation0]]
  $region98: #{alau_forward.4} parent=0
    _
  %s5 = ssub.s32 1, %s3
  %s6 = scalar_select 0, %s5, %s3
  $region1: #{alau_forward.4} parent=0
    #allocation2 [shape = 'u8[335872]{0}', space=vmem, size = 0x52000, scoped, tag = 'input window, operand 0']
    #allocation3 [shape = 'u8[147456]{0}', space=vmem, size = 0x24000, scoped, tag = 'output window, operand 0']
    loop: start=0, step=1, limit=4
    $region2: #{alau_forward.4} parent=1 // loop_pre_header
      _
    $region3: #{alau_forward.4} parent=1 // loop_header
      %s8 = sphi 0, %s12
      %p9 = scmp.ge.s32.totalorder %s8, 4
      %s18 = sphi 0, %s20
      %s21 = sphi 0, %s18
      %s22 = sphi 0, %s21
      %s38 = sphi 0, %s22
      %s42 = sphi 0, %s42
      %s44 = sphi 0, %s42
      %s45 = sphi 0, %s44
      %s59 = sphi 0, %s45
      %s65 = sphi 0, %s67
      %s68 = sphi 0, %s65
      %s69 = sphi 0, %s68
      %s85 = sphi 0, %s69
    $region4: #{alau_forward.4} parent=1 // loop_header_branch
      %11 = sbr.rel (%p9) target = $region8
    $region5: #{alau_forward.4} parent=1 // loop_body
      %s13 = ssub.s32 %s8, 1
      %s14 = ssub.s32 %s8, 2
      %s15 = sadd.s32 %s8, 1
      %s16 = ssub.s32 %s8, %s15
      %p17 = scmp.eq.s32.totalorder %s16, 0
      %s19 = sadd.s32 %s18, 1
      %s20 = scalar_select %p17, %s18, %s19
      %p23 = pneg %p17
      %p24 = scmp.eq.s32.totalorder %s8, 1
      %p25 = por %p23, %p24
      %p26 = scmp.ne.s32.totalorder %s18, %s21
      %p27 = scmp.eq.s32.totalorder %s8, 0
      %p28 = por %p26, %p27
      %p29 = scmp.ne.s32.totalorder %s18, %s21
      %p30 = scmp.eq.s32.totalorder %s13, 1
      %p31 = por %p29, %p30
      %p32 = scmp.ne.s32.totalorder %s21, %s22
      %p33 = scmp.eq.s32.totalorder %s13, 0
      %p34 = por %p32, %p33
      %p35 = scmp.ne.s32.totalorder %s21, %s22
      %p36 = scmp.eq.s32.totalorder %s14, 1
      %p37 = por %p35, %p36
      %p39 = scmp.ne.s32.totalorder %s22, %s38
      %p40 = scmp.eq.s32.totalorder %s14, 0
      %p41 = por %p39, %p40
      %s43 = sadd.s32 %s42, 1
      %p46 = scmp.eq.s32.totalorder %s8, 1
      %p47 = scmp.ne.s32.totalorder %s42, %s44
      %p48 = scmp.eq.s32.totalorder %s8, 0
      %p49 = por %p47, %p48
      %p50 = scmp.ne.s32.totalorder %s42, %s44
      %p51 = scmp.eq.s32.totalorder %s13, 1
      %p52 = por %p50, %p51
      %p53 = scmp.ne.s32.totalorder %s44, %s45
      %p54 = scmp.eq.s32.totalorder %s13, 0
      %p55 = por %p53, %p54
      %p56 = scmp.ne.s32.totalorder %s44, %s45
      %p57 = scmp.eq.s32.totalorder %s14, 1
      %p58 = por %p56, %p57
      %p60 = scmp.ne.s32.totalorder %s45, %s59
      %p61 = scmp.eq.s32.totalorder %s14, 0
      %p62 = por %p60, %p61
      %s63 = ssub.s32 %s8, %s15
      %p64 = scmp.eq.s32.totalorder %s63, 0
      %s66 = sadd.s32 %s65, 1
      %s67 = scalar_select %p64, %s65, %s66
      %p70 = pneg %p64
      %p71 = scmp.eq.s32.totalorder %s8, 1
      %p72 = por %p70, %p71
      %p73 = scmp.ne.s32.totalorder %s65, %s68
      %p74 = scmp.eq.s32.totalorder %s8, 0
      %p75 = por %p73, %p74
      %p76 = scmp.ne.s32.totalorder %s65, %s68
      %p77 = scmp.eq.s32.totalorder %s13, 1
      %p78 = por %p76, %p77
      %p79 = scmp.ne.s32.totalorder %s68, %s69
      %p80 = scmp.eq.s32.totalorder %s13, 0
      %p81 = por %p79, %p80
      %p82 = scmp.ne.s32.totalorder %s68, %s69
      %p83 = scmp.eq.s32.totalorder %s14, 1
      %p84 = por %p82, %p83
      %p86 = scmp.ne.s32.totalorder %s69, %s85
      %p87 = scmp.eq.s32.totalorder %s14, 0
      %p88 = por %p86, %p87
      %p89 = scmp.le.s32.totalorder 1, %s8
      %p90 = scmp.lt.s32.totalorder %s8, 3
      %p91 = pnand %p89, %p90
      %p92 = pneg %p91
      // Predicated region
      $region9: #{alau_forward.4} parent=5 // pred_check
        _
      $region10: #{alau_forward.4} parent=5 // pred_check_branch
        %94 = sbr.rel (%p91) target = $region12
      $region11: #{alau_forward.4} parent=5 // pred_region
        %s95 = ssub.s32 %s8, 1
        // Predicated region
        $region13: #{alau_forward.4} parent=11 // pred_check
          %p96 = pneg %p55
        $region14: #{alau_forward.4} parent=11 // pred_check_branch
          %98 = sbr.rel (%p96) target = $region16
        $region15: #{alau_forward.4} parent=11 // pred_region
          _
        $region16: #{alau_forward.4} parent=11 // pred_fallthru
          _
      $region12: #{alau_forward.4} parent=5 // pred_fallthru
        _
      %p99 = scmp.lt.s32.totalorder %s8, 2
      // Predicated region
      $region17: #{alau_forward.4} parent=5 // pred_check
        %p100 = pneg %p99
      $region18: #{alau_forward.4} parent=5 // pred_check_branch
        %102 = sbr.rel (%p100) target = $region20
      $region19: #{alau_forward.4} parent=5 // pred_region
        // Predicated region
        $region21: #{alau_forward.4} parent=19 // pred_check
          %p103 = pneg %p28
        $region22: #{alau_forward.4} parent=19 // pred_check_branch
          %105 = sbr.rel (%p103) target = $region24
        $region23: #{alau_forward.4} parent=19 // pred_region
          %s106 = sand.u32 %s18, 1
          %s107 = sand.u32 %s18, 1
          %s108 = smul.addr %s107, 328
          %s109 = scalar_lea.vmem [#allocation2], %s108
          %s110 = smul.u32 2, %s8
          %s111 = smul.addr %s110, 4
          %s112 = scalar_lea.vmem %s0, %s111
          // Predicated region
          $region25: #{alau_forward.4} parent=23 // pred_check
            _
          $region26: #{alau_forward.4} parent=23 // pred_check_branch
            %114 = sbr.rel (0) target = $region28
          $region27: #{alau_forward.4} parent=23 // pred_region
            // Predicated region
            $region29: #{alau_forward.4} parent=27 // pred_check
              _
            $region30: #{alau_forward.4} parent=27 // pred_check_branch
              %116 = sbr.rel (0) target = $region32
            $region31: #{alau_forward.4} parent=27 // pred_region
              // Predicated region
              $region44: #{alau_forward.4} parent=31 // pred_check
                _
              $region45: #{alau_forward.4} parent=31 // pred_check_branch
                %212 = sbr.rel (0) target = $region47
              $region46: #{alau_forward.4} parent=31 // pred_region
                loop: start=0, step=1, limit=1
                $region48: #{alau_forward.4} parent=46 // loop_pre_header
                  _
                $region49: #{alau_forward.4} parent=46 // loop_header
                  %s214 = sphi 0, %s218
                  %p215 = scmp.ge.s32.totalorder %s214, 1
                  %s219 = sphi %s112, %s112
                  %s220 = sphi %s109, %s109
                $region50: #{alau_forward.4} parent=46 // loop_header_branch
                  %217 = sbr.rel (%p215) target = $region54
                $region51: #{alau_forward.4} parent=46 // loop_body
                  %v221 = vld [vmem:[%s219] sm:$0xff]
                  %222 = vst [vmem:[%s220] sm:$0xff] %v221
                  %v223 = vld [vmem:[%s219 + $0x10] sm:$0xff]
                  %224 = vst [vmem:[%s220 + $0x8] sm:$0xff] %v223
                  %v225 = vld [vmem:[%s219 + $0x20] sm:$0xff]
                  %226 = vst [vmem:[%s220 + $0x10] sm:$0xff] %v225
                  %v227 = vld [vmem:[%s219 + $0x30] sm:$0xff]
                  %228 = vst [vmem:[%s220 + $0x18] sm:$0xff] %v227
                  %v229 = vld [vmem:[%s219 + $0x40] sm:$0xff]
                  %230 = vst [vmem:[%s220 + $0x20] sm:$0xff] %v229
                  %v231 = vld [vmem:[%s219 + $0x50] sm:$0xff]
                  %232 = vst [vmem:[%s220 + $0x28] sm:$0xff] %v231
                  %v233 = vld [vmem:[%s219 + $0x60] sm:$0xff]
                  %234 = vst [vmem:[%s220 + $0x30] sm:$0xff] %v233
                  %v235 = vld [vmem:[%s219 + $0x70] sm:$0xff]
                  %236 = vst [vmem:[%s220 + $0x38] sm:$0xff] %v235
                  %v237 = vld [vmem:[%s219 + $0x80] sm:$0xff]
                  %238 = vst [vmem:[%s220 + $0x40] sm:$0xff] %v237
                  %v239 = vld [vmem:[%s219 + $0x90] sm:$0xff]
                  %240 = vst [vmem:[%s220 + $0x48] sm:$0xff] %v239
                  %v241 = vld [vmem:[%s219 + $0xa0] sm:$0xff]
                  %242 = vst [vmem:[%s220 + $0x50] sm:$0xff] %v241
                  %v243 = vld [vmem:[%s219 + $0xb0] sm:$0xff]
                  %244 = vst [vmem:[%s220 + $0x58] sm:$0xff] %v243
                  %v245 = vld [vmem:[%s219 + $0xc0] sm:$0xff]
                  %246 = vst [vmem:[%s220 + $0x60] sm:$0xff] %v245
                  %v247 = vld [vmem:[%s219 + $0xd0] sm:$0xff]
                  %248 = vst [vmem:[%s220 + $0x68] sm:$0xff] %v247
                  %v249 = vld [vmem:[%s219 + $0xe0] sm:$0xff]
                  %250 = vst [vmem:[%s220 + $0x70] sm:$0xff] %v249
                  %v251 = vld [vmem:[%s219 + $0xf0] sm:$0xff]
                  %252 = vst [vmem:[%s220 + $0x78] sm:$0xff] %v251
                  %v253 = vld [vmem:[%s219 + $0x100] sm:$0xff]
                  %254 = vst [vmem:[%s220 + $0x80] sm:$0xff] %v253
                  %v255 = vld [vmem:[%s219 + $0x110] sm:$0xff]
                  %256 = vst [vmem:[%s220 + $0x88] sm:$0xff] %v255
                  %v257 = vld [vmem:[%s219 + $0x120] sm:$0xff]
                  %258 = vst [vmem:[%s220 + $0x90] sm:$0xff] %v257
                  %v259 = vld [vmem:[%s219 + $0x130] sm:$0xff]
                  %260 = vst [vmem:[%s220 + $0x98] sm:$0xff] %v259
                  %v261 = vld [vmem:[%s219 + $0x140] sm:$0xff]
                  %262 = vst [vmem:[%s220 + $0xa0] sm:$0xff] %v261
                  %v263 = vld [vmem:[%s219 + $0x150] sm:$0xff]
                  %264 = vst [vmem:[%s220 + $0xa8] sm:$0xff] %v263
                  %v265 = vld [vmem:[%s219 + $0x160] sm:$0xff]
                  %266 = vst [vmem:[%s220 + $0xb0] sm:$0xff] %v265
                  %v267 = vld [vmem:[%s219 + $0x170] sm:$0xff]
                  %268 = vst [vmem:[%s220 + $0xb8] sm:$0xff] %v267
                  %v269 = vld [vmem:[%s219 + $0x180] sm:$0xff]
                  %270 = vst [vmem:[%s220 + $0xc0] sm:$0xff] %v269
                  %v271 = vld [vmem:[%s219 + $0x190] sm:$0xff]
                  %272 = vst [vmem:[%s220 + $0xc8] sm:$0xff] %v271
                  %v273 = vld [vmem:[%s219 + $0x1a0] sm:$0xff]
                  %274 = vst [vmem:[%s220 + $0xd0] sm:$0xff] %v273
                  %v275 = vld [vmem:[%s219 + $0x1b0] sm:$0xff]
                  %276 = vst [vmem:[%s220 + $0xd8] sm:$0xff] %v275
                  %v277 = vld [vmem:[%s219 + $0x1c0] sm:$0xff]
                  %278 = vst [vmem:[%s220 + $0xe0] sm:$0xff] %v277
                  %v279 = vld [vmem:[%s219 + $0x1d0] sm:$0xff]
                  %280 = vst [vmem:[%s220 + $0xe8] sm:$0xff] %v279
                  %v281 = vld [vmem:[%s219 + $0x1e0] sm:$0xff]
                  %282 = vst [vmem:[%s220 + $0xf0] sm:$0xff] %v281
                  %v283 = vld [vmem:[%s219 + $0x1f0] sm:$0xff]
                  %284 = vst [vmem:[%s220 + $0xf8] sm:$0xff] %v283
                  %v285 = vld [vmem:[%s219 + $0x200] sm:$0xff]
                  %286 = vst [vmem:[%s220 + $0x100] sm:$0xff] %v285
                  %v287 = vld [vmem:[%s219 + $0x210] sm:$0xff]
                  %288 = vst [vmem:[%s220 + $0x108] sm:$0xff] %v287
                  %v289 = vld [vmem:[%s219 + $0x220] sm:$0xff]
                  %290 = vst [vmem:[%s220 + $0x110] sm:$0xff] %v289
                  %v291 = vld [vmem:[%s219 + $0x230] sm:$0xff]
                  %292 = vst [vmem:[%s220 + $0x118] sm:$0xff] %v291
                  %v293 = vld [vmem:[%s219 + $0x240] sm:$0xff]
                  %294 = vst [vmem:[%s220 + $0x120] sm:$0xff] %v293
                  %v295 = vld [vmem:[%s219 + $0x250] sm:$0xff]
                  %296 = vst [vmem:[%s220 + $0x128] sm:$0xff] %v295
                  %v297 = vld [vmem:[%s219 + $0x260] sm:$0xff]
                  %298 = vst [vmem:[%s220 + $0x130] sm:$0xff] %v297
                  %v299 = vld [vmem:[%s219 + $0x270] sm:$0xff]
                  %300 = vst [vmem:[%s220 + $0x138] sm:$0xff] %v299
                  %v301 = vld [vmem:[%s219 + $0x280] sm:$0xff]
                  %302 = vst [vmem:[%s220 + $0x140] sm:$0xff] %v301
                $region52: #{alau_forward.4} parent=46 // loop_footer
                  %s218 = sadd.s32 1, %s214
                $region53: #{alau_forward.4} parent=46 // loop_footer_branch
                  %213 = sbr.rel target = $region49
                $region54: #{alau_forward.4} parent=46 // loop_exit
                  _
              $region47: #{alau_forward.4} parent=31 // pred_fallthru
                _
              // Predicated region
              $region55: #{alau_forward.4} parent=31 // pred_check
                _
              $region56: #{alau_forward.4} parent=31 // pred_check_branch
                %304 = sbr.rel target = $region58
              $region57: #{alau_forward.4} parent=31 // pred_region
                _
              $region58: #{alau_forward.4} parent=31 // pred_fallthru
                _
            $region32: #{alau_forward.4} parent=27 // pred_fallthru
              _
            // Predicated region
            $region33: #{alau_forward.4} parent=27 // pred_check
              _
            $region34: #{alau_forward.4} parent=27 // pred_check_branch
              %118 = sbr.rel target = $region36
            $region35: #{alau_forward.4} parent=27 // pred_region
              %s120 = ssub.s32 256, 1
              loop: start=0, step=1, limit=1
              $region37: #{alau_forward.4} parent=35 // loop_pre_header
                _
              $region38: #{alau_forward.4} parent=35 // loop_header
                %s122 = sphi 0, %s126
                %p123 = scmp.ge.s32.totalorder %s122, 1
                %s127 = sphi %s112, %s112
                %s128 = sphi %s109, %s109
              $region39: #{alau_forward.4} parent=35 // loop_header_branch
                %125 = sbr.rel (%p123) target = $region43
              $region40: #{alau_forward.4} parent=35 // loop_body
                %v129 = vld [vmem:[%s127] sm:%s120]
                %130 = vst [vmem:[%s128] sm:%s120] %v129
                %v131 = vld [vmem:[%s127 + $0x10] sm:%s120]
                %132 = vst [vmem:[%s128 + $0x8] sm:%s120] %v131
                %v133 = vld [vmem:[%s127 + $0x20] sm:%s120]
                %134 = vst [vmem:[%s128 + $0x10] sm:%s120] %v133
                %v135 = vld [vmem:[%s127 + $0x30] sm:%s120]
                %136 = vst [vmem:[%s128 + $0x18] sm:%s120] %v135
                %v137 = vld [vmem:[%s127 + $0x40] sm:%s120]
                %138 = vst [vmem:[%s128 + $0x20] sm:%s120] %v137
                %v139 = vld [vmem:[%s127 + $0x50] sm:%s120]
                %140 = vst [vmem:[%s128 + $0x28] sm:%s120] %v139
                %v141 = vld [vmem:[%s127 + $0x60] sm:%s120]
                %142 = vst [vmem:[%s128 + $0x30] sm:%s120] %v141
                %v143 = vld [vmem:[%s127 + $0x70] sm:%s120]
                %144 = vst [vmem:[%s128 + $0x38] sm:%s120] %v143
                %v145 = vld [vmem:[%s127 + $0x80] sm:%s120]
                %146 = vst [vmem:[%s128 + $0x40] sm:%s120] %v145
                %v147 = vld [vmem:[%s127 + $0x90] sm:%s120]
                %148 = vst [vmem:[%s128 + $0x48] sm:%s120] %v147
                %v149 = vld [vmem:[%s127 + $0xa0] sm:%s120]
                %150 = vst [vmem:[%s128 + $0x50] sm:%s120] %v149
                %v151 = vld [vmem:[%s127 + $0xb0] sm:%s120]
                %152 = vst [vmem:[%s128 + $0x58] sm:%s120] %v151
                %v153 = vld [vmem:[%s127 + $0xc0] sm:%s120]
                %154 = vst [vmem:[%s128 + $0x60] sm:%s120] %v153
                %v155 = vld [vmem:[%s127 + $0xd0] sm:%s120]
                %156 = vst [vmem:[%s128 + $0x68] sm:%s120] %v155
                %v157 = vld [vmem:[%s127 + $0xe0] sm:%s120]
                %158 = vst [vmem:[%s128 + $0x70] sm:%s120] %v157
                %v159 = vld [vmem:[%s127 + $0xf0] sm:%s120]
                %160 = vst [vmem:[%s128 + $0x78] sm:%s120] %v159
                %v161 = vld [vmem:[%s127 + $0x100] sm:%s120]
                %162 = vst [vmem:[%s128 + $0x80] sm:%s120] %v161
                %v163 = vld [vmem:[%s127 + $0x110] sm:%s120]
                %164 = vst [vmem:[%s128 + $0x88] sm:%s120] %v163
                %v165 = vld [vmem:[%s127 + $0x120] sm:%s120]
                %166 = vst [vmem:[%s128 + $0x90] sm:%s120] %v165
                %v167 = vld [vmem:[%s127 + $0x130] sm:%s120]
                %168 = vst [vmem:[%s128 + $0x98] sm:%s120] %v167
                %v169 = vld [vmem:[%s127 + $0x140] sm:%s120]
                %170 = vst [vmem:[%s128 + $0xa0] sm:%s120] %v169
                %v171 = vld [vmem:[%s127 + $0x150] sm:%s120]
                %172 = vst [vmem:[%s128 + $0xa8] sm:%s120] %v171
                %v173 = vld [vmem:[%s127 + $0x160] sm:%s120]
                %174 = vst [vmem:[%s128 + $0xb0] sm:%s120] %v173
                %v175 = vld [vmem:[%s127 + $0x170] sm:%s120]
                %176 = vst [vmem:[%s128 + $0xb8] sm:%s120] %v175
                %v177 = vld [vmem:[%s127 + $0x180] sm:%s120]
                %178 = vst [vmem:[%s128 + $0xc0] sm:%s120] %v177
                %v179 = vld [vmem:[%s127 + $0x190] sm:%s120]
                %180 = vst [vmem:[%s128 + $0xc8] sm:%s120] %v179
                %v181 = vld [vmem:[%s127 + $0x1a0] sm:%s120]
                %182 = vst [vmem:[%s128 + $0xd0] sm:%s120] %v181
                %v183 = vld [vmem:[%s127 + $0x1b0] sm:%s120]
                %184 = vst [vmem:[%s128 + $0xd8] sm:%s120] %v183
                %v185 = vld [vmem:[%s127 + $0x1c0] sm:%s120]
                %186 = vst [vmem:[%s128 + $0xe0] sm:%s120] %v185
                %v187 = vld [vmem:[%s127 + $0x1d0] sm:%s120]
                %188 = vst [vmem:[%s128 + $0xe8] sm:%s120] %v187
                %v189 = vld [vmem:[%s127 + $0x1e0] sm:%s120]
                %190 = vst [vmem:[%s128 + $0xf0] sm:%s120] %v189
                %v191 = vld [vmem:[%s127 + $0x1f0] sm:%s120]
                %192 = vst [vmem:[%s128 + $0xf8] sm:%s120] %v191
                %v193 = vld [vmem:[%s127 + $0x200] sm:%s120]
                %194 = vst [vmem:[%s128 + $0x100] sm:%s120] %v193
                %v195 = vld [vmem:[%s127 + $0x210] sm:%s120]
                %196 = vst [vmem:[%s128 + $0x108] sm:%s120] %v195
                %v197 = vld [vmem:[%s127 + $0x220] sm:%s120]
                %198 = vst [vmem:[%s128 + $0x110] sm:%s120] %v197
                %v199 = vld [vmem:[%s127 + $0x230] sm:%s120]
                %200 = vst [vmem:[%s128 + $0x118] sm:%s120] %v199
                %v201 = vld [vmem:[%s127 + $0x240] sm:%s120]
                %202 = vst [vmem:[%s128 + $0x120] sm:%s120] %v201
                %v203 = vld [vmem:[%s127 + $0x250] sm:%s120]
                %204 = vst [vmem:[%s128 + $0x128] sm:%s120] %v203
                %v205 = vld [vmem:[%s127 + $0x260] sm:%s120]
                %206 = vst [vmem:[%s128 + $0x130] sm:%s120] %v205
                %v207 = vld [vmem:[%s127 + $0x270] sm:%s120]
                %208 = vst [vmem:[%s128 + $0x138] sm:%s120] %v207
                %v209 = vld [vmem:[%s127 + $0x280] sm:%s120]
                %210 = vst [vmem:[%s128 + $0x140] sm:%s120] %v209
              $region41: #{alau_forward.4} parent=35 // loop_footer
                %s126 = sadd.s32 1, %s122
              $region42: #{alau_forward.4} parent=35 // loop_footer_branch
                %121 = sbr.rel target = $region38
              $region43: #{alau_forward.4} parent=35 // loop_exit
                _
            $region36: #{alau_forward.4} parent=27 // pred_fallthru
              _
          $region28: #{alau_forward.4} parent=23 // pred_fallthru
            _
          %305 = vnop
        $region24: #{alau_forward.4} parent=19 // pred_fallthru
          _
      $region20: #{alau_forward.4} parent=5 // pred_fallthru
        _
      %p306 = scmp.le.s32.totalorder 1, %s8
      %p307 = scmp.lt.s32.totalorder %s8, 3
      %p308 = pnand %p306, %p307
      %p309 = pneg %p308
      // Predicated region
      $region59: #{alau_forward.4} parent=5 // pred_check
        _
      $region60: #{alau_forward.4} parent=5 // pred_check_branch
        %311 = sbr.rel (%p308) target = $region62
      $region61: #{alau_forward.4} parent=5 // pred_region
        %s312 = ssub.s32 %s8, 1
        %s313 = sand.u32 %s21, 1
        %s314 = sand.u32 %s21, 1
        %s315 = smul.addr %s314, 328
        %s316 = scalar_lea.vmem [#allocation2], %s315
        // Predicated region
        $region63: #{alau_forward.4} parent=61 // pred_check
          %p317 = pneg %p34
        $region64: #{alau_forward.4} parent=61 // pred_check_branch
          %319 = sbr.rel (%p317) target = $region66
        $region65: #{alau_forward.4} parent=61 // pred_region
          _
        $region66: #{alau_forward.4} parent=61 // pred_fallthru
          _
        %s320 = sand.u32 %s21, 1
        %s321 = sand.u32 %s21, 1
        %s322 = smul.addr %s321, 328
        %s323 = scalar_lea.vmem [#allocation2], %s322
        %p324 = pneg %p34
        %p325 = pneg %p31
        %p326 = pneg %p55
        %p327 = pneg %p52
        %p328 = pneg %p81
        %p329 = pneg %p78
        %s330 = sand.u32 %s68, 1
        %s331 = sand.u32 %s68, 1
        %s332 = smul.addr %s331, 144
        %s333 = scalar_lea.vmem [#allocation3], %s332
        %s334 = smul.u32 2, %s13
        %s335 = smul.u32 2, %s13
        %v337 = vld [vmem:[%s1] sm:$0xff]
        %v338 = vld [vmem:[%s1 + $0x8] sm:$0xf]
        %v339 = vld [vmem:[%s1 + $0xc] sm:$0xff]
        %v340 = vld [vmem:[%s1 + $0x14] sm:$0xf]
        %v341 = vld [vmem:[%s1 + $0x18] sm:$0xff]
        %v342 = vld [vmem:[%s1 + $0x20] sm:$0xf]
        %v343 = vld [vmem:[%s1 + $0x24] sm:$0xff]
        %v344 = vld [vmem:[%s1 + $0x2c] sm:$0xf]
        %v345 = vld [vmem:[%s1 + $0x30] sm:$0xff]
        %v346 = vld [vmem:[%s1 + $0x38] sm:$0xf]
        %v347 = vld [vmem:[%s1 + $0x3c] sm:$0xff]
        %v348 = vld [vmem:[%s1 + $0x44] sm:$0xf]
        %v349 = vld [vmem:[%s1 + $0x48] sm:$0xff]
        %v350 = vld [vmem:[%s1 + $0x50] sm:$0xf]
        %v351 = vld [vmem:[%s1 + $0x54] sm:$0xff]
        %v352 = vld [vmem:[%s1 + $0x5c] sm:$0xf]
        %v353 = vld [vmem:[%s1 + $0x60] sm:$0xff]
        %v354 = vld [vmem:[%s1 + $0x68] sm:$0xf]
        %v355 = vld [vmem:[%s316] sm:$0xff]
        %v356 = vld [vmem:[%s316 + $0x8] sm:$0xff]
        %v357 = vld [vmem:[%s316 + $0x10] sm:$0xff]
        %v358 = vld [vmem:[%s316 + $0x18] sm:$0xff]
        %v359 = vld [vmem:[%s316 + $0x20] sm:$0xff]
        %v360 = vld [vmem:[%s316 + $0x28] sm:$0xff]
        %v361 = vld [vmem:[%s316 + $0x30] sm:$0xff]
        %v362 = vld [vmem:[%s316 + $0x38] sm:$0xff]
        %v363 = vld [vmem:[%s316 + $0x40] sm:$0xff]
        %v364 = vld [vmem:[%s316 + $0x48] sm:$0xff]
        %v365 = vld [vmem:[%s316 + $0x50] sm:$0xff]
        %v366 = vld [vmem:[%s316 + $0x58] sm:$0xff]
        %v367 = vld [vmem:[%s316 + $0x60] sm:$0xff]
        %v368 = vld [vmem:[%s316 + $0x68] sm:$0xff]
        %v369 = vld [vmem:[%s316 + $0x70] sm:$0xff]
        %v370 = vld [vmem:[%s316 + $0x78] sm:$0xff]
        %v371 = vld [vmem:[%s316 + $0x80] sm:$0xff]
        %v372 = vld [vmem:[%s316 + $0x88] sm:$0xff]
        %v373 = vld [vmem:[%s316 + $0x90] sm:$0xff]
        %v374 = vld [vmem:[%s316 + $0x98] sm:$0xff]
        %v375 = vld [vmem:[%s316 + $0xa0] sm:$0xff]
        %v376 = vld [vmem:[%s316 + $0xa8] sm:$0xff]
        %v377 = vld [vmem:[%s316 + $0xb0] sm:$0xff]
        %v378 = vld [vmem:[%s316 + $0xb8] sm:$0xff]
        %v379 = vld [vmem:[%s316 + $0xc0] sm:$0xff]
        %v380 = vld [vmem:[%s316 + $0xc8] sm:$0xff]
        %v381 = vld [vmem:[%s316 + $0xd0] sm:$0xff]
        %v382 = vld [vmem:[%s316 + $0xd8] sm:$0xff]
        %v383 = vld [vmem:[%s316 + $0xe0] sm:$0xff]
        %v384 = vld [vmem:[%s316 + $0xe8] sm:$0xff]
        %v385 = vld [vmem:[%s316 + $0xf0] sm:$0xff]
        %v386 = vld [vmem:[%s316 + $0xf8] sm:$0xff]
        %v387 = vld [vmem:[%s316 + $0x100] sm:$0xff]
        %v388 = vld [vmem:[%s316 + $0x108] sm:$0xff]
        %v389 = vld [vmem:[%s316 + $0x110] sm:$0xff]
        %v390 = vld [vmem:[%s316 + $0x118] sm:$0xff]
        %v391 = vld [vmem:[%s316 + $0x120] sm:$0xff]
        %v392 = vld [vmem:[%s316 + $0x128] sm:$0xff]
        %v393 = vld [vmem:[%s316 + $0x130] sm:$0xff]
        %v394 = vld [vmem:[%s316 + $0x138] sm:$0xff]
        %v395 = vld [vmem:[%s316 + $0x140] sm:$0x77]
        %v414 = vunpack.c.l.b16 %v337
        %v415 = vunpack.c.h.b16 %v337
        %v416 = vunpack.c.l.b16 %v338
        %v417 = vunpack.c.l.b16 %v339
        %v418 = vunpack.c.h.b16 %v339
        %v419 = vunpack.c.l.b16 %v340
        %v420 = vunpack.c.l.b16 %v341
        %v421 = vunpack.c.h.b16 %v341
        %v422 = vunpack.c.l.b16 %v342
        %v423 = vunpack.c.l.b16 %v343
        %v424 = vunpack.c.h.b16 %v343
        %v425 = vunpack.c.l.b16 %v344
        %v426 = vunpack.c.l.b16 %v345
        %v427 = vunpack.c.h.b16 %v345
        %v428 = vunpack.c.l.b16 %v346
        %v429 = vunpack.c.l.b16 %v347
        %v430 = vunpack.c.h.b16 %v347
        %v431 = vunpack.c.l.b16 %v348
        %v432 = vunpack.c.l.b16 %v349
        %v433 = vunpack.c.h.b16 %v349
        %v434 = vunpack.c.l.b16 %v350
        %v435 = vunpack.c.l.b16 %v351
        %v436 = vunpack.c.h.b16 %v351
        %v437 = vunpack.c.l.b16 %v352
        %v438 = vunpack.c.l.b16 %v353
        %v439 = vunpack.c.h.b16 %v353
        %v440 = vunpack.c.l.b16 %v354
        %v441 = vpack.c.b16 %v417, %v414
        %v442 = vpack.c.b16 %v418, %v415
        %v443 = vpack.c.b16 %v419, %v416
        %v444 = vpack.c.b16 %v423, %v420
        %v445 = vpack.c.b16 %v424, %v421
        %v446 = vpack.c.b16 %v425, %v422
        %v447 = vpack.c.b16 %v429, %v426
        %v448 = vpack.c.b16 %v430, %v427
        %v449 = vpack.c.b16 %v431, %v428
        %v450 = vpack.c.b16 %v435, %v432
        %v451 = vpack.c.b16 %v436, %v433
        %v452 = vpack.c.b16 %v437, %v434
        %v453 = vpack.c.b16 %v438, %v438
        %v454 = vpack.c.b16 %v439, %v439
        %v455 = vpack.c.b16 %v440, %v440
        %v507 = vunpack.c.l.b16 %v355
        %v508 = vunpack.c.h.b16 %v355
        %v509 = vunpack.c.l.b16 %v356
        %v510 = vunpack.c.h.b16 %v356
        %v511 = vunpack.c.l.b16 %v357
        %v512 = vunpack.c.h.b16 %v357
        %v513 = vunpack.c.l.b16 %v358
        %v514 = vunpack.c.h.b16 %v358
        %v515 = vunpack.c.l.b16 %v359
        %v516 = vunpack.c.h.b16 %v359
        %v517 = vunpack.c.l.b16 %v360
        %v518 = vunpack.c.h.b16 %v360
        %v519 = vunpack.c.l.b16 %v361
        %v520 = vunpack.c.h.b16 %v361
        %v521 = vunpack.c.l.b16 %v362
        %v522 = vunpack.c.h.b16 %v362
        %v523 = vunpack.c.l.b16 %v363
        %v524 = vunpack.c.h.b16 %v363
        %v525 = vunpack.c.l.b16 %v364
        %v526 = vunpack.c.h.b16 %v364
        %v527 = vunpack.c.l.b16 %v365
        %v528 = vunpack.c.h.b16 %v365
        %v529 = vunpack.c.l.b16 %v366
        %v530 = vunpack.c.h.b16 %v366
        %v531 = vunpack.c.l.b16 %v367
        %v532 = vunpack.c.h.b16 %v367
        %v533 = vunpack.c.l.b16 %v368
        %v534 = vunpack.c.h.b16 %v368
        %v535 = vunpack.c.l.b16 %v369
        %v536 = vunpack.c.h.b16 %v369
        %v537 = vunpack.c.l.b16 %v370
        %v538 = vunpack.c.h.b16 %v370
        %v539 = vunpack.c.l.b16 %v371
        %v540 = vunpack.c.h.b16 %v371
        %v541 = vunpack.c.l.b16 %v372
        %v542 = vunpack.c.h.b16 %v372
        %v543 = vunpack.c.l.b16 %v373
        %v544 = vunpack.c.h.b16 %v373
        %v545 = vunpack.c.l.b16 %v374
        %v546 = vunpack.c.h.b16 %v374
        %v547 = vunpack.c.l.b16 %v375
        %v548 = vunpack.c.h.b16 %v375
        %v549 = vunpack.c.l.b16 %v376
        %v550 = vunpack.c.h.b16 %v376
        %v551 = vunpack.c.l.b16 %v377
        %v552 = vunpack.c.h.b16 %v377
        %v553 = vunpack.c.l.b16 %v378
        %v554 = vunpack.c.h.b16 %v378
        %v555 = vunpack.c.l.b16 %v379
        %v556 = vunpack.c.h.b16 %v379
        %v557 = vunpack.c.l.b16 %v380
        %v558 = vunpack.c.h.b16 %v380
        %v559 = vunpack.c.l.b16 %v381
        %v560 = vunpack.c.h.b16 %v381
        %v561 = vunpack.c.l.b16 %v382
        %v562 = vunpack.c.h.b16 %v382
        %v563 = vunpack.c.l.b16 %v383
        %v564 = vunpack.c.h.b16 %v383
        %v565 = vunpack.c.l.b16 %v384
        %v566 = vunpack.c.h.b16 %v384
        %v567 = vunpack.c.l.b16 %v385
        %v568 = vunpack.c.h.b16 %v385
        %v569 = vunpack.c.l.b16 %v386
        %v570 = vunpack.c.h.b16 %v386
        %v571 = vunpack.c.l.b16 %v387
        %v572 = vunpack.c.h.b16 %v387
        %v573 = vunpack.c.l.b16 %v388
        %v574 = vunpack.c.h.b16 %v388
        %v575 = vunpack.c.l.b16 %v389
        %v576 = vunpack.c.h.b16 %v389
        %v577 = vunpack.c.l.b16 %v390
        %v578 = vunpack.c.h.b16 %v390
        %v579 = vunpack.c.l.b16 %v391
        %v580 = vunpack.c.h.b16 %v391
        %v581 = vunpack.c.l.b16 %v392
        %v582 = vunpack.c.h.b16 %v392
        %v583 = vunpack.c.l.b16 %v393
        %v584 = vunpack.c.h.b16 %v393
        %v585 = vunpack.c.l.b16 %v394
        %v586 = vunpack.c.h.b16 %v394
        %v587 = vunpack.c.l.b16 %v395
        %v588 = vunpack.c.h.b16 %v395
        %v589 = vpack.c.b16 %v509, %v507
        %v590 = vpack.c.b16 %v510, %v508
        %v591 = vpack.c.b16 %v513, %v511
        %v592 = vpack.c.b16 %v514, %v512
        %v593 = vpack.c.b16 %v517, %v515
        %v594 = vpack.c.b16 %v518, %v516
        %v595 = vpack.c.b16 %v521, %v519
        %v596 = vpack.c.b16 %v522, %v520
        %v597 = vpack.c.b16 %v525, %v523
        %v598 = vpack.c.b16 %v526, %v524
        %v599 = vpack.c.b16 %v529, %v527
        %v600 = vpack.c.b16 %v530, %v528
        %v601 = vpack.c.b16 %v533, %v531
        %v602 = vpack.c.b16 %v534, %v532
        %v603 = vpack.c.b16 %v537, %v535
        %v604 = vpack.c.b16 %v538, %v536
        %v605 = vpack.c.b16 %v541, %v539
        %v606 = vpack.c.b16 %v542, %v540
        %v607 = vpack.c.b16 %v545, %v543
        %v608 = vpack.c.b16 %v546, %v544
        %v609 = vpack.c.b16 %v549, %v547
        %v610 = vpack.c.b16 %v550, %v548
        %v611 = vpack.c.b16 %v553, %v551
        %v612 = vpack.c.b16 %v554, %v552
        %v613 = vpack.c.b16 %v557, %v555
        %v614 = vpack.c.b16 %v558, %v556
        %v615 = vpack.c.b16 %v561, %v559
        %v616 = vpack.c.b16 %v562, %v560
        %v617 = vpack.c.b16 %v565, %v563
        %v618 = vpack.c.b16 %v566, %v564
        %v619 = vpack.c.b16 %v569, %v567
        %v620 = vpack.c.b16 %v570, %v568
        %v621 = vpack.c.b16 %v573, %v571
        %v622 = vpack.c.b16 %v574, %v572
        %v623 = vpack.c.b16 %v577, %v575
        %v624 = vpack.c.b16 %v578, %v576
        %v625 = vpack.c.b16 %v581, %v579
        %v626 = vpack.c.b16 %v582, %v580
        %v627 = vpack.c.b16 %v585, %v583
        %v628 = vpack.c.b16 %v586, %v584
        %v629 = vpack.c.b16 %v587, %v587
        %v630 = vpack.c.b16 %v588, %v588
        %vm671 = vcmask 564224
        %v673 = vsel %vm671, %v443, 0
        %v676 = vsel %vm671, %v446, 0
        %v679 = vsel %vm671, %v449, 0
        %v682 = vsel %vm671, %v452, 0
        %v685 = vsel %vm671, %v455, 0
        %vm687 = vcmask 1041408
        %vm688 = vcmask 1042432
        %v689 = vsel %vm687, 4294967295, 65535
        %v690 = vsel %vm688, %v689, 0
        %v692 = vand.u32 %v629, %v690
        %v695 = vand.u32 %v630, %v690
        %697 = vmatprep.subr.bf16.mxu0 %v604
        %698 = vmatpush1.bf16.msra.mxu0 %v603
        %699 = vmatprep.subr.bf16.mxu0 %v602
        %700 = vmatpush1.bf16.msra.mxu0 %v601
        %701 = vmatprep.subr.bf16.mxu0 %v600
        %702 = vmatpush1.bf16.msra.mxu0 %v599
        %703 = vmatprep.subr.bf16.mxu0 %v598
        %704 = vmatpush1.bf16.msra.mxu0 %v597
        %705 = vmatprep.subr.bf16.mxu0 %v596
        %706 = vmatpush1.bf16.msra.mxu0 %v595
        %707 = vmatprep.subr.bf16.mxu0 %v594
        %708 = vmatpush1.bf16.msra.mxu0 %v593
        %709 = vmatprep.subr.bf16.mxu0 %v592
        %710 = vmatpush1.bf16.msra.mxu0 %v591
        %711 = vmatprep.subr.bf16.mxu0 %v590
        %712 = vmatpush1.bf16.msra.mxu0 %v589
        %713 = vmatprep.subr.bf16.mxu0 %v620
        %714 = vmatpush2.bf16.msra.mxu0 %v619
        %715 = vmatprep.subr.bf16.mxu0 %v618
        %716 = vmatpush2.bf16.msra.mxu0 %v617
        %717 = vmatprep.subr.bf16.mxu0 %v616
        %718 = vmatpush2.bf16.msra.mxu0 %v615
        %719 = vmatprep.subr.bf16.mxu0 %v614
        %720 = vmatpush2.bf16.msra.mxu0 %v613
        %721 = vmatprep.subr.bf16.mxu0 %v612
        %722 = vmatpush2.bf16.msra.mxu0 %v611
        %723 = vmatprep.subr.bf16.mxu0 %v610
        %724 = vmatpush2.bf16.msra.mxu0 %v609
        %725 = vmatprep.subr.bf16.mxu0 %v608
        %726 = vmatpush2.bf16.msra.mxu0 %v607
        %727 = vmatprep.subr.bf16.mxu0 %v606
        %728 = vmatpush2.bf16.msra.mxu0 %v605
        %729 = vmatprep.mubr.bf16.mxu0 %v442
        %730 = vmatmul.mubr.bf16.gmra.mxu0 %v441
        %v731 = vpop.f32.mrf.mxu0
        %v732 = vadd.f32 0.0, %v731
        %v733 = vpop.f32.mrf.mxu0
        %v734 = vadd.f32 0.0, %v733
        %v735 = vpop.f32.mrf.mxu0
        %v736 = vadd.f32 0.0, %v735
        %v737 = vpop.f32.mrf.mxu0
        %v738 = vadd.f32 0.0, %v737
        %739 = vmatprep.mubr.bf16.mxu0 %v445
        %740 = vmatmul.mubr.bf16.gmra.mxu0 %v444
        %v741 = vpop.f32.mrf.mxu0
        %v742 = vadd.f32 0.0, %v741
        %v743 = vpop.f32.mrf.mxu0
        %v744 = vadd.f32 0.0, %v743
        %v745 = vpop.f32.mrf.mxu0
        %v746 = vadd.f32 0.0, %v745
        %v747 = vpop.f32.mrf.mxu0
        %v748 = vadd.f32 0.0, %v747
        %749 = vmatprep.mubr.bf16.mxu0 %v448
        %750 = vmatmul.mubr.bf16.gmra.mxu0 %v447
        %v751 = vpop.f32.mrf.mxu0
        %v752 = vadd.f32 0.0, %v751
        %v753 = vpop.f32.mrf.mxu0
        %v754 = vadd.f32 0.0, %v753
        %v755 = vpop.f32.mrf.mxu0
        %v756 = vadd.f32 0.0, %v755
        %v757 = vpop.f32.mrf.mxu0
        %v758 = vadd.f32 0.0, %v757
        %759 = vmatprep.mubr.bf16.mxu0 %v451
        %760 = vmatmul.mubr.bf16.gmra.mxu0 %v450
        %v761 = vpop.f32.mrf.mxu0
        %v762 = vadd.f32 0.0, %v761
        %v763 = vpop.f32.mrf.mxu0
        %v764 = vadd.f32 0.0, %v763
        %v765 = vpop.f32.mrf.mxu0
        %v766 = vadd.f32 0.0, %v765
        %v767 = vpop.f32.mrf.mxu0
        %v768 = vadd.f32 0.0, %v767
        %769 = vmatprep.mubr.bf16.mxu0 %v454
        %770 = vmatmul.mubr.bf16.gmra.mxu0 %v453
        %v771 = vpop.f32.mrf.mxu0
        %v772 = vadd.f32 0.0, %v771
        %v773 = vpop.f32.mrf.mxu0
        %v774 = vadd.f32 0.0, %v773
        %v775 = vpop.f32.mrf.mxu0
        %v776 = vpop.f32.mrf.mxu0
        %777 = vdwg.mxu0
        %778 = vmatprep.subr.bf16.mxu0 0
        %779 = vmatpush1.bf16.msra.mxu0 0
        %780 = vmatprep.subr.bf16.mxu0 0
        %781 = vmatpush1.bf16.msra.mxu0 0
        %782 = vmatprep.subr.bf16.mxu0 0
        %783 = vmatpush1.bf16.msra.mxu0 0
        %784 = vmatprep.subr.bf16.mxu0 %v695
        %785 = vmatpush1.bf16.msra.mxu0 %v692
        %786 = vmatprep.subr.bf16.mxu0 %v628
        %787 = vmatpush1.bf16.msra.mxu0 %v627
        %788 = vmatprep.subr.bf16.mxu0 %v626
        %789 = vmatpush1.bf16.msra.mxu0 %v625
        %790 = vmatprep.subr.bf16.mxu0 %v624
        %791 = vmatpush1.bf16.msra.mxu0 %v623
        %792 = vmatprep.subr.bf16.mxu0 %v622
        %793 = vmatpush1.bf16.msra.mxu0 %v621
        %794 = vmatprep.subr.bf16.mxu0 0
        %795 = vmatpush2.bf16.msra.mxu0 0
        %796 = vmatprep.subr.bf16.mxu0 0
        %797 = vmatpush2.bf16.msra.mxu0 0
        %798 = vmatprep.subr.bf16.mxu0 0
        %799 = vmatpush2.bf16.msra.mxu0 0
        %800 = vmatprep.subr.bf16.mxu0 0
        %801 = vmatpush2.bf16.msra.mxu0 0
        %802 = vmatprep.subr.bf16.mxu0 0
        %803 = vmatpush2.bf16.msra.mxu0 0
        %804 = vmatprep.subr.bf16.mxu0 0
        %805 = vmatpush2.bf16.msra.mxu0 0
        %806 = vmatprep.subr.bf16.mxu0 0
        %807 = vmatpush2.bf16.msra.mxu0 0
        %808 = vmatprep.subr.bf16.mxu0 0
        %809 = vmatpush2.bf16.msra.mxu0 0
        %810 = vmatprep.mubr.bf16.mxu0 0
        %811 = vmatmul.mubr.bf16.gmra.mxu0 %v673
        %v812 = vpop.f32.mrf.mxu0
        %v813 = vadd.f32 %v732, %v812
        %v814 = vpop.f32.mrf.mxu0
        %v815 = vadd.f32 %v734, %v814
        %v816 = vpop.f32.mrf.mxu0
        %v817 = vadd.f32 %v736, %v816
        %v818 = vpop.f32.mrf.mxu0
        %v819 = vadd.f32 %v738, %v818
        %820 = vmatprep.mubr.bf16.mxu0 0
        %821 = vmatmul.mubr.bf16.gmra.mxu0 %v676
        %v822 = vpop.f32.mrf.mxu0
        %v823 = vadd.f32 %v742, %v822
        %v824 = vpop.f32.mrf.mxu0
        %v825 = vadd.f32 %v744, %v824
        %v826 = vpop.f32.mrf.mxu0
        %v827 = vadd.f32 %v746, %v826
        %v828 = vpop.f32.mrf.mxu0
        %v829 = vadd.f32 %v748, %v828
        %830 = vmatprep.mubr.bf16.mxu0 0
        %831 = vmatmul.mubr.bf16.gmra.mxu0 %v679
        %v832 = vpop.f32.mrf.mxu0
        %v833 = vadd.f32 %v752, %v832
        %v834 = vpop.f32.mrf.mxu0
        %v835 = vadd.f32 %v754, %v834
        %v836 = vpop.f32.mrf.mxu0
        %v837 = vadd.f32 %v756, %v836
        %v838 = vpop.f32.mrf.mxu0
        %v839 = vadd.f32 %v758, %v838
        %840 = vmatprep.mubr.bf16.mxu0 0
        %841 = vmatmul.mubr.bf16.gmra.mxu0 %v682
        %v842 = vpop.f32.mrf.mxu0
        %v843 = vadd.f32 %v762, %v842
        %v844 = vpop.f32.mrf.mxu0
        %v845 = vadd.f32 %v764, %v844
        %v846 = vpop.f32.mrf.mxu0
        %v847 = vadd.f32 %v766, %v846
        %v848 = vpop.f32.mrf.mxu0
        %v849 = vadd.f32 %v768, %v848
        %850 = vmatprep.mubr.bf16.mxu0 0
        %851 = vmatmul.mubr.bf16.gmra.mxu0 %v685
        %v852 = vpop.f32.mrf.mxu0
        %v853 = vadd.f32 %v772, %v852
        %v854 = vpop.f32.mrf.mxu0
        %v855 = vadd.f32 %v774, %v854
        %v856 = vpop.f32.mrf.mxu0
        %v857 = vpop.f32.mrf.mxu0
        %858 = vdwg.mxu0
        %859 = vst [vmem:[%s333] sm:$0xff] %v813
        %860 = vst [vmem:[%s333 + $0x8] sm:$0xff] %v815
        %861 = vst [vmem:[%s333 + $0x10] sm:$0xff] %v817
        %862 = vst [vmem:[%s333 + $0x18] sm:$0xff] %v819
        %863 = vst [vmem:[%s333 + $0x20] sm:$0xff] %v823
        %864 = vst [vmem:[%s333 + $0x28] sm:$0xff] %v825
        %865 = vst [vmem:[%s333 + $0x30] sm:$0xff] %v827
        %866 = vst [vmem:[%s333 + $0x38] sm:$0xff] %v829
        %867 = vst [vmem:[%s333 + $0x40] sm:$0xff] %v833
        %868 = vst [vmem:[%s333 + $0x48] sm:$0xff] %v835
        %869 = vst [vmem:[%s333 + $0x50] sm:$0xff] %v837
        %870 = vst [vmem:[%s333 + $0x58] sm:$0xff] %v839
        %871 = vst [vmem:[%s333 + $0x60] sm:$0xff] %v843
        %872 = vst [vmem:[%s333 + $0x68] sm:$0xff] %v845
        %873 = vst [vmem:[%s333 + $0x70] sm:$0xff] %v847
        %874 = vst [vmem:[%s333 + $0x78] sm:$0xff] %v849
        %875 = vst [vmem:[%s333 + $0x80] sm:$0xff] %v853
        %876 = vst [vmem:[%s333 + $0x88] sm:$0xff] %v855
        %s877 = sand.u32 %s68, 1
        %s878 = sand.u32 %s68, 1
        %s879 = smul.addr %s878, 144
        %s880 = scalar_lea.vmem [#allocation3], %s879
        // Predicated region
        $region67: #{alau_forward.4} parent=61 // pred_check
          %p881 = pneg %p78
        $region68: #{alau_forward.4} parent=61 // pred_check_branch
          %883 = sbr.rel (%p881) target = $region70
        $region69: #{alau_forward.4} parent=61 // pred_region
          %s884 = smul.u32 2, %s13
          %s885 = smul.addr %s884, 8
          %s886 = scalar_lea.vmem %s2, %s885
          // Predicated region
          $region71: #{alau_forward.4} parent=69 // pred_check
            _
          $region72: #{alau_forward.4} parent=69 // pred_check_branch
            %888 = sbr.rel (0) target = $region74
          $region73: #{alau_forward.4} parent=69 // pred_region
            // Predicated region
            $region75: #{alau_forward.4} parent=73 // pred_check
              _
            $region76: #{alau_forward.4} parent=73 // pred_check_branch
              %890 = sbr.rel (0) target = $region78
            $region77: #{alau_forward.4} parent=73 // pred_region
              loop: start=0, step=1, limit=1
              $region79: #{alau_forward.4} parent=77 // loop_pre_header
                _
              $region80: #{alau_forward.4} parent=77 // loop_header
                %s892 = sphi 0, %s896
                %p893 = scmp.ge.s32.totalorder %s892, 1
                %s897 = sphi %s880, %s880
                %s898 = sphi %s886, %s886
              $region81: #{alau_forward.4} parent=77 // loop_header_branch
                %895 = sbr.rel (%p893) target = $region85
              $region82: #{alau_forward.4} parent=77 // loop_body
                %v899 = vld [vmem:[%s897] sm:$0xff]
                %900 = vst [vmem:[%s898] sm:$0xff] %v899
                %v901 = vld [vmem:[%s897 + $0x8] sm:$0xff]
                %902 = vst [vmem:[%s898 + $0x8] sm:$0xff] %v901
                %v903 = vld [vmem:[%s897 + $0x10] sm:$0xff]
                %904 = vst [vmem:[%s898 + $0x20] sm:$0xff] %v903
                %v905 = vld [vmem:[%s897 + $0x18] sm:$0xff]
                %906 = vst [vmem:[%s898 + $0x28] sm:$0xff] %v905
                %v907 = vld [vmem:[%s897 + $0x20] sm:$0xff]
                %908 = vst [vmem:[%s898 + $0x40] sm:$0xff] %v907
                %v909 = vld [vmem:[%s897 + $0x28] sm:$0xff]
                %910 = vst [vmem:[%s898 + $0x48] sm:$0xff] %v909
                %v911 = vld [vmem:[%s897 + $0x30] sm:$0xff]
                %912 = vst [vmem:[%s898 + $0x60] sm:$0xff] %v911
                %v913 = vld [vmem:[%s897 + $0x38] sm:$0xff]
                %914 = vst [vmem:[%s898 + $0x68] sm:$0xff] %v913
                %v915 = vld [vmem:[%s897 + $0x40] sm:$0xff]
                %916 = vst [vmem:[%s898 + $0x80] sm:$0xff] %v915
                %v917 = vld [vmem:[%s897 + $0x48] sm:$0xff]
                %918 = vst [vmem:[%s898 + $0x88] sm:$0xff] %v917
                %v919 = vld [vmem:[%s897 + $0x50] sm:$0xff]
                %920 = vst [vmem:[%s898 + $0xa0] sm:$0xff] %v919
                %v921 = vld [vmem:[%s897 + $0x58] sm:$0xff]
                %922 = vst [vmem:[%s898 + $0xa8] sm:$0xff] %v921
                %v923 = vld [vmem:[%s897 + $0x60] sm:$0xff]
                %924 = vst [vmem:[%s898 + $0xc0] sm:$0xff] %v923
                %v925 = vld [vmem:[%s897 + $0x68] sm:$0xff]
                %926 = vst [vmem:[%s898 + $0xc8] sm:$0xff] %v925
                %v927 = vld [vmem:[%s897 + $0x70] sm:$0xff]
                %928 = vst [vmem:[%s898 + $0xe0] sm:$0xff] %v927
                %v929 = vld [vmem:[%s897 + $0x78] sm:$0xff]
                %930 = vst [vmem:[%s898 + $0xe8] sm:$0xff] %v929
                %v931 = vld [vmem:[%s897 + $0x80] sm:$0xff]
                %932 = vst [vmem:[%s898 + $0x100] sm:$0xff] %v931
                %v933 = vld [vmem:[%s897 + $0x88] sm:$0xff]
                %934 = vst [vmem:[%s898 + $0x108] sm:$0xff] %v933
              $region83: #{alau_forward.4} parent=77 // loop_footer
                %s896 = sadd.s32 1, %s892
              $region84: #{alau_forward.4} parent=77 // loop_footer_branch
                %891 = sbr.rel target = $region80
              $region85: #{alau_forward.4} parent=77 // loop_exit
                _
            $region78: #{alau_forward.4} parent=73 // pred_fallthru
              _
            // Predicated region
            $region86: #{alau_forward.4} parent=73 // pred_check
              _
            $region87: #{alau_forward.4} parent=73 // pred_check_branch
              %936 = sbr.rel target = $region89
            $region88: #{alau_forward.4} parent=73 // pred_region
              _
            $region89: #{alau_forward.4} parent=73 // pred_fallthru
              _
          $region74: #{alau_forward.4} parent=69 // pred_fallthru
            _
          %937 = vnop
        $region70: #{alau_forward.4} parent=61 // pred_fallthru
          _
      $region62: #{alau_forward.4} parent=5 // pred_fallthru
        _
      %p938 = scmp.le.s32.totalorder 2, %s8
      // Predicated region
      $region90: #{alau_forward.4} parent=5 // pred_check
        %p939 = pneg %p938
      $region91: #{alau_forward.4} parent=5 // pred_check_branch
        %941 = sbr.rel (%p939) target = $region93
      $region92: #{alau_forward.4} parent=5 // pred_region
        %s942 = ssub.s32 %s8, 2
        // Predicated region
        $region94: #{alau_forward.4} parent=92 // pred_check
          %p943 = pneg %p84
        $region95: #{alau_forward.4} parent=92 // pred_check_branch
          %945 = sbr.rel (%p943) target = $region97
        $region96: #{alau_forward.4} parent=92 // pred_region
          %s946 = sand.u32 %s69, 1
          %s947 = sand.u32 %s69, 1
          %s948 = smul.addr %s947, 144
          %s949 = scalar_lea.vmem [#allocation3], %s948
        $region97: #{alau_forward.4} parent=92 // pred_fallthru
          _
      $region93: #{alau_forward.4} parent=5 // pred_fallthru
        _
    $region6: #{alau_forward.4} parent=1 // loop_footer
      %s12 = sadd.s32 1, %s8
    $region7: #{alau_forward.4} parent=1 // loop_footer_branch
      %7 = sbr.rel target = $region3
    $region8: #{alau_forward.4} parent=1 // loop_exit
      _

// kernel: alau_forward.5
$region0: #{alau_forward.5}
  #allocation0 [shape = 'u32[]', space=smem, size = 0x4, offset = 0x4, fixed_abs, tag = 'smem constant byte address 0x4 - core index']
  #allocation1 [shape = 'u32[144,128]{1,0:T(1,128)}', space=vmem, size = 0x12000, scoped, tag = 'internal scratch']
  %s0 = inlined_call_operand.vmem [shape: bf16[72,512], index: 0, kind: input, shape index: {}]
  %s1 = inlined_call_operand.vmem [shape: bf16[8,72], index: 1, kind: input, shape index: {}]
  %s2 = inlined_call_operand.vmem [shape: f32[8,512], index: 2, kind: output, shape index: {}]
  %s3 = sld [smem:[#allocation0]]
  $region79: #{alau_forward.5} parent=0
    _
  %s5 = ssub.s32 1, %s3
  %s6 = scalar_select 0, %s5, %s3
  $region1: #{alau_forward.5} parent=0
    #allocation2 [shape = 'u8[73728]{0}', space=vmem, size = 0x12000, scoped, tag = 'input window, operand 0']
    loop: start=0, step=1, limit=4
    $region2: #{alau_forward.5} parent=1 // loop_pre_header
      _
    $region3: #{alau_forward.5} parent=1 // loop_header
      %s8 = sphi 0, %s12
      %p9 = scmp.ge.s32.totalorder %s8, 4
      %s18 = sphi 0, %s20
      %s21 = sphi 0, %s18
      %s22 = sphi 0, %s21
      %s38 = sphi 0, %s22
      %s42 = sphi 0, %s42
      %s44 = sphi 0, %s42
      %s45 = sphi 0, %s44
      %s59 = sphi 0, %s45
      %s65 = sphi 0, %s67
      %s68 = sphi 0, %s65
      %s69 = sphi 0, %s68
      %s85 = sphi 0, %s69
    $region4: #{alau_forward.5} parent=1 // loop_header_branch
      %11 = sbr.rel (%p9) target = $region8
    $region5: #{alau_forward.5} parent=1 // loop_body
      %s13 = ssub.s32 %s8, 1
      %s14 = ssub.s32 %s8, 2
      %s15 = sadd.s32 %s8, 1
      %s16 = ssub.s32 %s8, %s15
      %p17 = scmp.eq.s32.totalorder %s16, 0
      %s19 = sadd.s32 %s18, 1
      %s20 = scalar_select %p17, %s18, %s19
      %p23 = pneg %p17
      %p24 = scmp.eq.s32.totalorder %s8, 1
      %p25 = por %p23, %p24
      %p26 = scmp.ne.s32.totalorder %s18, %s21
      %p27 = scmp.eq.s32.totalorder %s8, 0
      %p28 = por %p26, %p27
      %p29 = scmp.ne.s32.totalorder %s18, %s21
      %p30 = scmp.eq.s32.totalorder %s13, 1
      %p31 = por %p29, %p30
      %p32 = scmp.ne.s32.totalorder %s21, %s22
      %p33 = scmp.eq.s32.totalorder %s13, 0
      %p34 = por %p32, %p33
      %p35 = scmp.ne.s32.totalorder %s21, %s22
      %p36 = scmp.eq.s32.totalorder %s14, 1
      %p37 = por %p35, %p36
      %p39 = scmp.ne.s32.totalorder %s22, %s38
      %p40 = scmp.eq.s32.totalorder %s14, 0
      %p41 = por %p39, %p40
      %s43 = sadd.s32 %s42, 1
      %p46 = scmp.eq.s32.totalorder %s8, 1
      %p47 = scmp.ne.s32.totalorder %s42, %s44
      %p48 = scmp.eq.s32.totalorder %s8, 0
      %p49 = por %p47, %p48
      %p50 = scmp.ne.s32.totalorder %s42, %s44
      %p51 = scmp.eq.s32.totalorder %s13, 1
      %p52 = por %p50, %p51
      %p53 = scmp.ne.s32.totalorder %s44, %s45
      %p54 = scmp.eq.s32.totalorder %s13, 0
      %p55 = por %p53, %p54
      %p56 = scmp.ne.s32.totalorder %s44, %s45
      %p57 = scmp.eq.s32.totalorder %s14, 1
      %p58 = por %p56, %p57
      %p60 = scmp.ne.s32.totalorder %s45, %s59
      %p61 = scmp.eq.s32.totalorder %s14, 0
      %p62 = por %p60, %p61
      %s63 = ssub.s32 %s8, %s15
      %p64 = scmp.eq.s32.totalorder %s63, 0
      %s66 = sadd.s32 %s65, 1
      %s67 = scalar_select %p64, %s65, %s66
      %p70 = pneg %p64
      %p71 = scmp.eq.s32.totalorder %s8, 1
      %p72 = por %p70, %p71
      %p73 = scmp.ne.s32.totalorder %s65, %s68
      %p74 = scmp.eq.s32.totalorder %s8, 0
      %p75 = por %p73, %p74
      %p76 = scmp.ne.s32.totalorder %s65, %s68
      %p77 = scmp.eq.s32.totalorder %s13, 1
      %p78 = por %p76, %p77
      %p79 = scmp.ne.s32.totalorder %s68, %s69
      %p80 = scmp.eq.s32.totalorder %s13, 0
      %p81 = por %p79, %p80
      %p82 = scmp.ne.s32.totalorder %s68, %s69
      %p83 = scmp.eq.s32.totalorder %s14, 1
      %p84 = por %p82, %p83
      %p86 = scmp.ne.s32.totalorder %s69, %s85
      %p87 = scmp.eq.s32.totalorder %s14, 0
      %p88 = por %p86, %p87
      %p89 = scmp.le.s32.totalorder 1, %s8
      %p90 = scmp.lt.s32.totalorder %s8, 3
      %p91 = pnand %p89, %p90
      %p92 = pneg %p91
      // Predicated region
      $region9: #{alau_forward.5} parent=5 // pred_check
        _
      $region10: #{alau_forward.5} parent=5 // pred_check_branch
        %94 = sbr.rel (%p91) target = $region12
      $region11: #{alau_forward.5} parent=5 // pred_region
        %s95 = ssub.s32 %s8, 1
        // Predicated region
        $region13: #{alau_forward.5} parent=11 // pred_check
          %p96 = pneg %p55
        $region14: #{alau_forward.5} parent=11 // pred_check_branch
          %98 = sbr.rel (%p96) target = $region16
        $region15: #{alau_forward.5} parent=11 // pred_region
          _
        $region16: #{alau_forward.5} parent=11 // pred_fallthru
          _
      $region12: #{alau_forward.5} parent=5 // pred_fallthru
        _
      %p99 = scmp.lt.s32.totalorder %s8, 2
      // Predicated region
      $region17: #{alau_forward.5} parent=5 // pred_check
        %p100 = pneg %p99
      $region18: #{alau_forward.5} parent=5 // pred_check_branch
        %102 = sbr.rel (%p100) target = $region20
      $region19: #{alau_forward.5} parent=5 // pred_region
        // Predicated region
        $region21: #{alau_forward.5} parent=19 // pred_check
          %p103 = pneg %p28
        $region22: #{alau_forward.5} parent=19 // pred_check_branch
          %105 = sbr.rel (%p103) target = $region24
        $region23: #{alau_forward.5} parent=19 // pred_region
          %s106 = sand.u32 %s18, 1
          %s107 = sand.u32 %s18, 1
          %s108 = smul.addr %s107, 72
          %s109 = scalar_lea.vmem [#allocation2], %s108
          %s110 = smul.u32 2, %s8
          %s111 = smul.addr %s110, 4
          %s112 = scalar_lea.vmem %s0, %s111
          // Predicated region
          $region25: #{alau_forward.5} parent=23 // pred_check
            _
          $region26: #{alau_forward.5} parent=23 // pred_check_branch
            %114 = sbr.rel (0) target = $region28
          $region27: #{alau_forward.5} parent=23 // pred_region
            // Predicated region
            $region29: #{alau_forward.5} parent=27 // pred_check
              _
            $region30: #{alau_forward.5} parent=27 // pred_check_branch
              %116 = sbr.rel (0) target = $region32
            $region31: #{alau_forward.5} parent=27 // pred_region
              // Predicated region
              $region44: #{alau_forward.5} parent=31 // pred_check
                _
              $region45: #{alau_forward.5} parent=31 // pred_check_branch
                %148 = sbr.rel (0) target = $region47
              $region46: #{alau_forward.5} parent=31 // pred_region
                loop: start=0, step=1, limit=1
                $region48: #{alau_forward.5} parent=46 // loop_pre_header
                  _
                $region49: #{alau_forward.5} parent=46 // loop_header
                  %s150 = sphi 0, %s154
                  %p151 = scmp.ge.s32.totalorder %s150, 1
                  %s155 = sphi %s112, %s112
                  %s156 = sphi %s109, %s109
                $region50: #{alau_forward.5} parent=46 // loop_header_branch
                  %153 = sbr.rel (%p151) target = $region54
                $region51: #{alau_forward.5} parent=46 // loop_body
                  %v157 = vld [vmem:[%s155] sm:$0xff]
                  %158 = vst [vmem:[%s156] sm:$0xff] %v157
                  %v159 = vld [vmem:[%s155 + $0x10] sm:$0xff]
                  %160 = vst [vmem:[%s156 + $0x8] sm:$0xff] %v159
                  %v161 = vld [vmem:[%s155 + $0x20] sm:$0xff]
                  %162 = vst [vmem:[%s156 + $0x10] sm:$0xff] %v161
                  %v163 = vld [vmem:[%s155 + $0x30] sm:$0xff]
                  %164 = vst [vmem:[%s156 + $0x18] sm:$0xff] %v163
                  %v165 = vld [vmem:[%s155 + $0x40] sm:$0xff]
                  %166 = vst [vmem:[%s156 + $0x20] sm:$0xff] %v165
                  %v167 = vld [vmem:[%s155 + $0x50] sm:$0xff]
                  %168 = vst [vmem:[%s156 + $0x28] sm:$0xff] %v167
                  %v169 = vld [vmem:[%s155 + $0x60] sm:$0xff]
                  %170 = vst [vmem:[%s156 + $0x30] sm:$0xff] %v169
                  %v171 = vld [vmem:[%s155 + $0x70] sm:$0xff]
                  %172 = vst [vmem:[%s156 + $0x38] sm:$0xff] %v171
                  %v173 = vld [vmem:[%s155 + $0x80] sm:$0xff]
                  %174 = vst [vmem:[%s156 + $0x40] sm:$0xff] %v173
                $region52: #{alau_forward.5} parent=46 // loop_footer
                  %s154 = sadd.s32 1, %s150
                $region53: #{alau_forward.5} parent=46 // loop_footer_branch
                  %149 = sbr.rel target = $region49
                $region54: #{alau_forward.5} parent=46 // loop_exit
                  _
              $region47: #{alau_forward.5} parent=31 // pred_fallthru
                _
              // Predicated region
              $region55: #{alau_forward.5} parent=31 // pred_check
                _
              $region56: #{alau_forward.5} parent=31 // pred_check_branch
                %176 = sbr.rel target = $region58
              $region57: #{alau_forward.5} parent=31 // pred_region
                _
              $region58: #{alau_forward.5} parent=31 // pred_fallthru
                _
            $region32: #{alau_forward.5} parent=27 // pred_fallthru
              _
            // Predicated region
            $region33: #{alau_forward.5} parent=27 // pred_check
              _
            $region34: #{alau_forward.5} parent=27 // pred_check_branch
              %118 = sbr.rel target = $region36
            $region35: #{alau_forward.5} parent=27 // pred_region
              %s120 = ssub.s32 256, 1
              loop: start=0, step=1, limit=1
              $region37: #{alau_forward.5} parent=35 // loop_pre_header
                _
              $region38: #{alau_forward.5} parent=35 // loop_header
                %s122 = sphi 0, %s126
                %p123 = scmp.ge.s32.totalorder %s122, 1
                %s127 = sphi %s112, %s112
                %s128 = sphi %s109, %s109
              $region39: #{alau_forward.5} parent=35 // loop_header_branch
                %125 = sbr.rel (%p123) target = $region43
              $region40: #{alau_forward.5} parent=35 // loop_body
                %v129 = vld [vmem:[%s127] sm:%s120]
                %130 = vst [vmem:[%s128] sm:%s120] %v129
                %v131 = vld [vmem:[%s127 + $0x10] sm:%s120]
                %132 = vst [vmem:[%s128 + $0x8] sm:%s120] %v131
                %v133 = vld [vmem:[%s127 + $0x20] sm:%s120]
                %134 = vst [vmem:[%s128 + $0x10] sm:%s120] %v133
                %v135 = vld [vmem:[%s127 + $0x30] sm:%s120]
                %136 = vst [vmem:[%s128 + $0x18] sm:%s120] %v135
                %v137 = vld [vmem:[%s127 + $0x40] sm:%s120]
                %138 = vst [vmem:[%s128 + $0x20] sm:%s120] %v137
                %v139 = vld [vmem:[%s127 + $0x50] sm:%s120]
                %140 = vst [vmem:[%s128 + $0x28] sm:%s120] %v139
                %v141 = vld [vmem:[%s127 + $0x60] sm:%s120]
                %142 = vst [vmem:[%s128 + $0x30] sm:%s120] %v141
                %v143 = vld [vmem:[%s127 + $0x70] sm:%s120]
                %144 = vst [vmem:[%s128 + $0x38] sm:%s120] %v143
                %v145 = vld [vmem:[%s127 + $0x80] sm:%s120]
                %146 = vst [vmem:[%s128 + $0x40] sm:%s120] %v145
              $region41: #{alau_forward.5} parent=35 // loop_footer
                %s126 = sadd.s32 1, %s122
              $region42: #{alau_forward.5} parent=35 // loop_footer_branch
                %121 = sbr.rel target = $region38
              $region43: #{alau_forward.5} parent=35 // loop_exit
                _
            $region36: #{alau_forward.5} parent=27 // pred_fallthru
              _
          $region28: #{alau_forward.5} parent=23 // pred_fallthru
            _
          %177 = vnop
        $region24: #{alau_forward.5} parent=19 // pred_fallthru
          _
      $region20: #{alau_forward.5} parent=5 // pred_fallthru
        _
      %p178 = scmp.le.s32.totalorder 1, %s8
      %p179 = scmp.lt.s32.totalorder %s8, 3
      %p180 = pnand %p178, %p179
      %p181 = pneg %p180
      // Predicated region
      $region59: #{alau_forward.5} parent=5 // pred_check
        _
      $region60: #{alau_forward.5} parent=5 // pred_check_branch
        %183 = sbr.rel (%p180) target = $region62
      $region61: #{alau_forward.5} parent=5 // pred_region
        %s184 = ssub.s32 %s8, 1
        %s185 = sand.u32 %s21, 1
        %s186 = sand.u32 %s21, 1
        %s187 = smul.addr %s186, 72
        %s188 = scalar_lea.vmem [#allocation2], %s187
        // Predicated region
        $region63: #{alau_forward.5} parent=61 // pred_check
          %p189 = pneg %p34
        $region64: #{alau_forward.5} parent=61 // pred_check_branch
          %191 = sbr.rel (%p189) target = $region66
        $region65: #{alau_forward.5} parent=61 // pred_region
          _
        $region66: #{alau_forward.5} parent=61 // pred_fallthru
          _
        %s192 = sand.u32 %s21, 1
        %s193 = sand.u32 %s21, 1
        %s194 = smul.addr %s193, 72
        %s195 = scalar_lea.vmem [#allocation2], %s194
        %p196 = pneg %p34
        %p197 = pneg %p31
        %p198 = pneg %p55
        %p199 = pneg %p52
        %p200 = pneg %p81
        %p201 = pneg %p78
        %s202 = smul.u32 2, %s13
        %p203 = scmp.lt.s32.totalorder %s202, 3
        %s204 = scalar_select %p203, %s202, 3
        %s205 = smul.addr %s204, 8
        %s206 = scalar_lea.vmem %s2, %s205
        %s207 = smul.u32 2, %s13
        %s208 = smul.u32 2, %s13
        %p209 = scmp.lt.s32.totalorder %s208, 3
        %s210 = scalar_select %p209, %s208, 3
        %s211 = smul.addr %s210, 8
        %s212 = scalar_lea.vmem %s2, %s211
        %s213 = smul.u32 2, %s13
        %v215 = vld [vmem:[%s1] sm:$0xf]
        %v216 = vld [vmem:[%s188] sm:$0xff]
        %v217 = vld [vmem:[%s188 + $0x8] sm:$0xff]
        %v218 = vld [vmem:[%s188 + $0x10] sm:$0xff]
        %v219 = vld [vmem:[%s188 + $0x18] sm:$0xff]
        %v220 = vld [vmem:[%s188 + $0x20] sm:$0xff]
        %v221 = vld [vmem:[%s188 + $0x28] sm:$0xff]
        %v222 = vld [vmem:[%s188 + $0x30] sm:$0xff]
        %v223 = vld [vmem:[%s188 + $0x38] sm:$0xff]
        %v224 = vld [vmem:[%s188 + $0x40] sm:$0xff]
        %v234 = vunpack.c.l.b16 %v216
        %v235 = vunpack.c.h.b16 %v216
        %v236 = vunpack.c.l.b16 %v217
        %v237 = vunpack.c.h.b16 %v217
        %v238 = vunpack.c.l.b16 %v218
        %v239 = vunpack.c.h.b16 %v218
        %v240 = vunpack.c.l.b16 %v219
        %v241 = vunpack.c.h.b16 %v219
        %v242 = vunpack.c.l.b16 %v220
        %v243 = vunpack.c.h.b16 %v220
        %v244 = vunpack.c.l.b16 %v221
        %v245 = vunpack.c.h.b16 %v221
        %v246 = vunpack.c.l.b16 %v222
        %v247 = vunpack.c.h.b16 %v222
        %v248 = vunpack.c.l.b16 %v223
        %v249 = vunpack.c.h.b16 %v223
        %v250 = vunpack.c.l.b16 %v224
        %v251 = vunpack.c.h.b16 %v224
        %v252 = vpack.c.b16 %v236, %v234
        %v253 = vpack.c.b16 %v237, %v235
        %v254 = vpack.c.b16 %v240, %v238
        %v255 = vpack.c.b16 %v241, %v239
        %v256 = vpack.c.b16 %v244, %v242
        %v257 = vpack.c.b16 %v245, %v243
        %v258 = vpack.c.b16 %v248, %v246
        %v259 = vpack.c.b16 %v249, %v247
        %v260 = vpack.c.b16 %v250, %v250
        %v261 = vpack.c.b16 %v251, %v251
        %vm270 = vcmask 588800
        %v272 = vsel %vm270, %v215, 0
        %vm274 = vcmask 1043456
        %v276 = vsel %vm274, %v260, 0
        %v279 = vsel %vm274, %v261, 0
        %281 = vmatprep.subr.bf16.mxu0 0
        %282 = vmatpush1.bf16.msra.mxu0 0
        %283 = vmatprep.subr.bf16.mxu0 0
        %284 = vmatpush1.bf16.msra.mxu0 0
        %285 = vmatprep.subr.bf16.mxu0 0
        %286 = vmatpush1.bf16.msra.mxu0 0
        %287 = vmatprep.subr.bf16.mxu0 %v279
        %288 = vmatpush1.bf16.msra.mxu0 %v276
        %289 = vmatprep.subr.bf16.mxu0 %v259
        %290 = vmatpush1.bf16.msra.mxu0 %v258
        %291 = vmatprep.subr.bf16.mxu0 %v257
        %292 = vmatpush1.bf16.msra.mxu0 %v256
        %293 = vmatprep.subr.bf16.mxu0 %v255
        %294 = vmatpush1.bf16.msra.mxu0 %v254
        %295 = vmatprep.subr.bf16.mxu0 %v253
        %296 = vmatpush1.bf16.msra.mxu0 %v252
        %297 = vmatprep.subr.bf16.mxu0 0
        %298 = vmatpush2.bf16.msra.mxu0 0
        %299 = vmatprep.subr.bf16.mxu0 0
        %300 = vmatpush2.bf16.msra.mxu0 0
        %301 = vmatprep.subr.bf16.mxu0 0
        %302 = vmatpush2.bf16.msra.mxu0 0
        %303 = vmatprep.subr.bf16.mxu0 0
        %304 = vmatpush2.bf16.msra.mxu0 0
        %305 = vmatprep.subr.bf16.mxu0 0
        %306 = vmatpush2.bf16.msra.mxu0 0
        %307 = vmatprep.subr.bf16.mxu0 0
        %308 = vmatpush2.bf16.msra.mxu0 0
        %309 = vmatprep.subr.bf16.mxu0 0
        %310 = vmatpush2.bf16.msra.mxu0 0
        %311 = vmatprep.subr.bf16.mxu0 0
        %312 = vmatpush2.bf16.msra.mxu0 0
        %313 = vmatprep.mubr.bf16.mxu0 0
        %314 = vmatmul.mubr.bf16.gmra.mxu0 %v272
        %v315 = vpop.f32.mrf.mxu0
        %v316 = vadd.f32 0.0, %v315
        %v317 = vpop.f32.mrf.mxu0
        %v318 = vadd.f32 0.0, %v317
        %v319 = vpop.f32.mrf.mxu0
        %v320 = vpop.f32.mrf.mxu0
        %321 = vdwg.mxu0
        %v322 = vmax.f32 %v316, 0.0
        %v323 = vmax.f32 %v318, 0.0
        %324 = vst [vmem:[%s212] sm:$0xff] %v322
        %325 = vst [vmem:[%s212 + $0x8] sm:$0xff] %v323
        %s326 = smul.u32 2, %s13
        %p327 = scmp.lt.s32.totalorder %s326, 3
        %s328 = scalar_select %p327, %s326, 3
        %s329 = smul.addr %s328, 8
        %s330 = scalar_lea.vmem %s2, %s329
        // Predicated region
        $region67: #{alau_forward.5} parent=61 // pred_check
          %p331 = pneg %p78
        $region68: #{alau_forward.5} parent=61 // pred_check_branch
          %333 = sbr.rel (%p331) target = $region70
        $region69: #{alau_forward.5} parent=61 // pred_region
          %s334 = smul.u32 2, %s13
        $region70: #{alau_forward.5} parent=61 // pred_fallthru
          _
      $region62: #{alau_forward.5} parent=5 // pred_fallthru
        _
      %p335 = scmp.le.s32.totalorder 2, %s8
      // Predicated region
      $region71: #{alau_forward.5} parent=5 // pred_check
        %p336 = pneg %p335
      $region72: #{alau_forward.5} parent=5 // pred_check_branch
        %338 = sbr.rel (%p336) target = $region74
      $region73: #{alau_forward.5} parent=5 // pred_region
        %s339 = ssub.s32 %s8, 2
        // Predicated region
        $region75: #{alau_forward.5} parent=73 // pred_check
          %p340 = pneg %p84
        $region76: #{alau_forward.5} parent=73 // pred_check_branch
          %342 = sbr.rel (%p340) target = $region78
        $region77: #{alau_forward.5} parent=73 // pred_region
          %s343 = smul.u32 2, %s14
          %p344 = scmp.lt.s32.totalorder %s343, 3
          %s345 = scalar_select %p344, %s343, 3
          %s346 = smul.addr %s345, 8
          %s347 = scalar_lea.vmem %s2, %s346
        $region78: #{alau_forward.5} parent=73 // pred_fallthru
          _
      $region74: #{alau_forward.5} parent=5 // pred_fallthru
        _
    $region6: #{alau_forward.5} parent=1 // loop_footer
      %s12 = sadd.s32 1, %s8
    $region7: #{alau_forward.5} parent=1 // loop_footer_branch
      %7 = sbr.rel target = $region3
    $region8: #{alau_forward.5} parent=1 // loop_exit
      _

</llo_original>
